<compile_context>
chip_gen: v5e
topology: v5e:2x2
jax: 0.10.0
libtpu: 0.0.40
codegen_flags: <defaults>
</compile_context>

<pallas_src>
import jax
import jax.numpy as jnp
from jax.experimental import pallas as pl
from jax.experimental.pallas import tpu as pltpu

RES = 16       # resolution (last dim of the input)
H0 = 128       # fc0 width
H1 = 256       # fc1/fc2 width
NBLOCKS = 4    # sog0..sog3 / w0..w3


def _round_up(x, m):
    return (x + m - 1) // m * m


def sog1d_kernel(x_ref,                       # (TB, R)            VMEM
                 w0_ref, b0_ref,              # (4, R, 128), (4, 1, 128)
                 w1_ref, b1_ref,              # (4, 128, 256), (4, 1, 256)
                 w2_ref,                      # (4, 256, 256)   (b2 folded away)
                 wo_ref, bo_ref,              # (4, 256, R) [scale*exp(b2) folded in], (4, 1, R)
                 cw_ref, cb_ref,              # (4,), (4,)          SMEM scalars
                 o_ref):                      # (TB, R)            VMEM
    x = x_ref[...]                            # (TB, R) f32
    wdt = w0_ref.dtype                        # MXU input dtype (f32 or bf16)
    # Statically unrolled over the 4 SOG blocks; all weights live in VMEM
    # and are resident across the whole batch grid.
    for i in range(NBLOCKS):
        h = jnp.square(x)
        h = jnp.tanh(jnp.dot(h.astype(wdt), w0_ref[i],
                             preferred_element_type=jnp.float32) + b0_ref[i])
        h = jnp.tanh(jnp.dot(h.astype(wdt), w1_ref[i],
                             preferred_element_type=jnp.float32) + b1_ref[i])
        h = jnp.dot(h.astype(wdt), w2_ref[i],
                    preferred_element_type=jnp.float32)
        h = jnp.exp(h)                        # b2 + scale folded into wo_ref
        h = jnp.dot(h.astype(wdt), wo_ref[i],
                    preferred_element_type=jnp.float32) + bo_ref[i]
        # residual 1x1 conv branch: w_i(x) = cw*x + cb  (scalars from SMEM)
        x = h + x * cw_ref[i] + cb_ref[i]
    o_ref[...] = x


def sog1d_forward(x, params, *, block_b=1024, compute_dtype=jnp.float32):
    """x: (B, 1, R) float32 -> (B, 1, R) float32 (matches PyTorch SOG1d).

    compute_dtype: jnp.float32 (default, v5e-safe) or jnp.bfloat16
    (recommended for matmul inputs on v6e/v7x).
    """
    w0, b0, w1, b1, w2, b2, sc, wo, bo, cw, cb = params
    B, C, R = x.shape
    assert C == 1 and R == RES
    f32 = jnp.float32
    x2d = x.reshape(B, R).astype(f32)

    # --- one-time parameter fold:  exp(h + b2)*sc @ wo == exp(h) @ (diag(sc*exp(b2)) @ wo)
    # TODO(synk): if real checkpoints have very large b2, clamp or skip this fold (exp(b2) overflow).
    v = (sc.astype(f32) * jnp.exp(b2.astype(f32)))          # (4, 1, 256)
    wo_f = jnp.transpose(v, (0, 2, 1)) * wo.astype(f32)     # (4, 256, R)

    w0c = w0.astype(compute_dtype)
    w1c = w1.astype(compute_dtype)
    w2c = w2.astype(compute_dtype)
    woc = wo_f.astype(compute_dtype)
    b0c = b0.astype(f32)
    b1c = b1.astype(f32)
    boc = bo.astype(f32)
    cwc = cw.astype(f32)
    cbc = cb.astype(f32)

    # --- batch tiling: bound VMEM, enable pipelining + megacore sharding.
    tb = min(block_b, _round_up(B, 8))
    Bp = _round_up(B, tb)
    if Bp != B:
        x2d = jnp.pad(x2d, ((0, Bp - B), (0, 0)))
    grid = (Bp // tb,)

    def wspec(a):
        nd = a.ndim
        return pl.BlockSpec(a.shape, lambda i, nd=nd: (0,) * nd)  # weight resident

    smem = pl.BlockSpec(memory_space=pltpu.MemorySpace.SMEM)

    # Advisory cost estimate (this kernel is EUP/transcendental-bound, not MXU-bound).
    flops_per_row = 2 * (RES * H0 + H0 * H1 + H1 * H1 + H1 * RES) * NBLOCKS
    trans_per_row = (H0 + H1 + H1) * NBLOCKS
    bytes_weights = sum(int(a.size) * int(a.dtype.itemsize)
                        for a in (w0c, b0c, w1c, b1c, w2c, woc, boc, cwc, cbc))
    cost = pl.CostEstimate(
        flops=int(flops_per_row) * int(Bp),
        transcendentals=int(trans_per_row) * int(Bp),
        bytes_accessed=2 * int(Bp) * RES * 4 + int(bytes_weights),
    )

    out = pl.pallas_call(
        sog1d_kernel,
        out_shape=jax.ShapeDtypeStruct((Bp, RES), f32),
        grid=grid,
        in_specs=[
            pl.BlockSpec((tb, RES), lambda i: (i, 0)),   # x tile
            wspec(w0c), wspec(b0c),
            wspec(w1c), wspec(b1c),
            wspec(w2c),
            wspec(woc), wspec(boc),
            smem, smem,                                   # cw, cb scalars
        ],
        out_specs=pl.BlockSpec((tb, RES), lambda i: (i, 0)),
        compiler_params=pltpu.CompilerParams(
            dimension_semantics=("parallel",),            # megacore on v7x
            vmem_limit_bytes=48 * 1024 * 1024,            # fits v7x's 64 MiB VMEM
        ),
        cost_estimate=cost,
    )(x2d, w0c, b0c, w1c, b1c, w2c, woc, boc, cwc, cbc)

    return out[:B].reshape(B, 1, RES)


def make_params(key):
    """Deterministic synthetic parameters (shapes match SOG1d.__init__)."""
    ks = jax.random.split(key, 12)
    s = 0.1  # small weights so exp() stays tame
    w0 = s * jax.random.normal(ks[0], (NBLOCKS, RES, H0), jnp.float32)
    b0 = s * jax.random.normal(ks[1], (NBLOCKS, 1, H0), jnp.float32)
    w1 = s * jax.random.normal(ks[2], (NBLOCKS, H0, H1), jnp.float32)
    b1 = s * jax.random.normal(ks[3], (NBLOCKS, 1, H1), jnp.float32)
    w2 = s * jax.random.normal(ks[4], (NBLOCKS, H1, H1), jnp.float32)
    b2 = s * jax.random.normal(ks[5], (NBLOCKS, 1, H1), jnp.float32)
    sc = jax.random.uniform(ks[6], (NBLOCKS, 1, H1), jnp.float32)   # nn.Parameter(torch.rand(256))
    wo = s * jax.random.normal(ks[7], (NBLOCKS, H1, RES), jnp.float32)
    bo = s * jax.random.normal(ks[8], (NBLOCKS, 1, RES), jnp.float32)
    cw = jax.random.normal(ks[9], (NBLOCKS,), jnp.float32)           # Conv1d(1,1,1) weight
    cb = s * jax.random.normal(ks[10], (NBLOCKS,), jnp.float32)      # Conv1d(1,1,1) bias
    return (w0, b0, w1, b1, w2, b2, sc, wo, bo, cw, cb)


def ref_forward(x, params):
    """Pure-JAX reference of the PyTorch forward (for correctness check)."""
    w0, b0, w1, b1, w2, b2, sc, wo, bo, cw, cb = params
    B, C, R = x.shape
    h = x.reshape(B, R).astype(jnp.float32)
    for i in range(NBLOCKS):
        y = jnp.square(h)
        y = jnp.tanh(y @ w0[i] + b0[i])
        y = jnp.tanh(y @ w1[i] + b1[i])
        y = y @ w2[i] + b2[i]
        y = jnp.exp(y) * sc[i]
        y = y @ wo[i] + bo[i]
        h = y + h * cw[i] + cb[i]
    return h.reshape(B, 1, R)


if __name__ == "__main__":
    key = jax.random.PRNGKey(0)
    k_x, k_p = jax.random.split(key)

    B = 2
    x = jax.random.normal(k_x, (B, 1, RES), jnp.float32)
    params = make_params(k_p)

    out = sog1d_forward(x, params)          # f32 compute (v5e-safe default)
    out = jax.block_until_ready(out)

    ref = ref_forward(x, params)
    assert out.shape == (B, 1, RES)
    assert jnp.allclose(out, ref, rtol=1e-3, atol=1e-3), \
        f"max abs err = {jnp.max(jnp.abs(out - ref))}"

    print("KERNEL_OK")
</pallas_src>

<mosaic_0001>
module attributes {stable_mosaic.version = 11 : i64} {
  func.func @sog1d_kernel(%arg0: i32, %arg1: memref<8x16xf32, #tpu.memory_space<vmem>>, %arg2: memref<4x16x128xf32, #tpu.memory_space<vmem>>, %arg3: memref<4x1x128xf32, #tpu.memory_space<vmem>>, %arg4: memref<4x128x256xf32, #tpu.memory_space<vmem>>, %arg5: memref<4x1x256xf32, #tpu.memory_space<vmem>>, %arg6: memref<4x256x256xf32, #tpu.memory_space<vmem>>, %arg7: memref<4x256x16xf32, #tpu.memory_space<vmem>>, %arg8: memref<4x1x16xf32, #tpu.memory_space<vmem>>, %arg9: memref<4xf32, #tpu.memory_space<smem>>, %arg10: memref<4xf32, #tpu.memory_space<smem>>, %arg11: memref<8x16xf32, #tpu.memory_space<vmem>>) attributes {dimension_semantics = [#tpu.dimension_semantics<parallel>], iteration_bounds = array<i64: 1>, scalar_prefetch = 0 : i64, scratch_operands = 0 : i64, tpu.core_type = #tpu.core_type<tc>, window_params = [{transform_indices = @transform_0, window_bounds = array<i64: 8, 16>}, {pipeline_mode = #tpu.pipeline_mode<synchronous>, transform_indices = @transform_1, window_bounds = array<i64: 4, 16, 128>}, {pipeline_mode = #tpu.pipeline_mode<synchronous>, transform_indices = @transform_2, window_bounds = array<i64: 4, 1, 128>}, {pipeline_mode = #tpu.pipeline_mode<synchronous>, transform_indices = @transform_3, window_bounds = array<i64: 4, 128, 256>}, {pipeline_mode = #tpu.pipeline_mode<synchronous>, transform_indices = @transform_4, window_bounds = array<i64: 4, 1, 256>}, {pipeline_mode = #tpu.pipeline_mode<synchronous>, transform_indices = @transform_5, window_bounds = array<i64: 4, 256, 256>}, {pipeline_mode = #tpu.pipeline_mode<synchronous>, transform_indices = @transform_6, window_bounds = array<i64: 4, 256, 16>}, {pipeline_mode = #tpu.pipeline_mode<synchronous>, transform_indices = @transform_7, window_bounds = array<i64: 4, 1, 16>}, {transform_indices = @transform_8, window_bounds = array<i64: 4>}, {transform_indices = @transform_9, window_bounds = array<i64: 4>}, {transform_indices = @transform_10, window_bounds = array<i64: 8, 16>}]} {
    %c0 = arith.constant 0 : index
    %c0_0 = arith.constant 0 : index
    %0 = vector.load %arg1[%c0, %c0_0] : memref<8x16xf32, #tpu.memory_space<vmem>>, vector<8x16xf32>
    %1 = arith.mulf %0, %0 : vector<8x16xf32>
    %c0_1 = arith.constant 0 : index
    %c0_2 = arith.constant 0 : index
    %c0_3 = arith.constant 0 : index
    %2 = vector.load %arg2[%c0_1, %c0_2, %c0_3] : memref<4x16x128xf32, #tpu.memory_space<vmem>>, vector<1x16x128xf32>
    %3 = vector.shape_cast %2 : vector<1x16x128xf32> to vector<16x128xf32>
    %cst = arith.constant dense<0.000000e+00> : vector<8x128xf32>
    %4 = tpu.matmul %1, %3, %cst {dimension_numbers = #tpu.dot_dimension_numbers<[1], [0], [0], [1], [0, 0, 1, 1], [], []>} : vector<8x16xf32>, vector<16x128xf32>, vector<8x128xf32> -> vector<8x128xf32>
    %c0_4 = arith.constant 0 : index
    %c0_5 = arith.constant 0 : index
    %c0_6 = arith.constant 0 : index
    %5 = vector.load %arg3[%c0_4, %c0_5, %c0_6] : memref<4x1x128xf32, #tpu.memory_space<vmem>>, vector<1x1x128xf32>
    %6 = vector.shape_cast %5 : vector<1x1x128xf32> to vector<1x128xf32>
    %7 = vector.broadcast %6 : vector<1x128xf32> to vector<8x128xf32>
    %8 = arith.addf %4, %7 : vector<8x128xf32>
    %9 = math.tanh %8 : vector<8x128xf32>
    %c0_7 = arith.constant 0 : index
    %c0_8 = arith.constant 0 : index
    %c0_9 = arith.constant 0 : index
    %10 = vector.load %arg4[%c0_7, %c0_8, %c0_9] : memref<4x128x256xf32, #tpu.memory_space<vmem>>, vector<1x128x256xf32>
    %11 = vector.shape_cast %10 : vector<1x128x256xf32> to vector<128x256xf32>
    %cst_10 = arith.constant dense<0.000000e+00> : vector<8x256xf32>
    %12 = tpu.matmul %9, %11, %cst_10 {dimension_numbers = #tpu.dot_dimension_numbers<[1], [0], [0], [1], [0, 0, 1, 1], [], []>} : vector<8x128xf32>, vector<128x256xf32>, vector<8x256xf32> -> vector<8x256xf32>
    %c0_11 = arith.constant 0 : index
    %c0_12 = arith.constant 0 : index
    %c0_13 = arith.constant 0 : index
    %13 = vector.load %arg5[%c0_11, %c0_12, %c0_13] : memref<4x1x256xf32, #tpu.memory_space<vmem>>, vector<1x1x256xf32>
    %14 = vector.shape_cast %13 : vector<1x1x256xf32> to vector<1x256xf32>
    %15 = vector.broadcast %14 : vector<1x256xf32> to vector<8x256xf32>
    %16 = arith.addf %12, %15 : vector<8x256xf32>
    %17 = math.tanh %16 : vector<8x256xf32>
    %c0_14 = arith.constant 0 : index
    %c0_15 = arith.constant 0 : index
    %c0_16 = arith.constant 0 : index
    %18 = vector.load %arg6[%c0_14, %c0_15, %c0_16] : memref<4x256x256xf32, #tpu.memory_space<vmem>>, vector<1x256x256xf32>
    %19 = vector.shape_cast %18 : vector<1x256x256xf32> to vector<256x256xf32>
    %cst_17 = arith.constant dense<0.000000e+00> : vector<8x256xf32>
    %20 = tpu.matmul %17, %19, %cst_17 {dimension_numbers = #tpu.dot_dimension_numbers<[1], [0], [0], [1], [0, 0, 1, 1], [], []>} : vector<8x256xf32>, vector<256x256xf32>, vector<8x256xf32> -> vector<8x256xf32>
    %21 = math.exp %20 : vector<8x256xf32>
    %c0_18 = arith.constant 0 : index
    %c0_19 = arith.constant 0 : index
    %c0_20 = arith.constant 0 : index
    %22 = vector.load %arg7[%c0_18, %c0_19, %c0_20] : memref<4x256x16xf32, #tpu.memory_space<vmem>>, vector<1x256x16xf32>
    %23 = vector.shape_cast %22 : vector<1x256x16xf32> to vector<256x16xf32>
    %cst_21 = arith.constant dense<0.000000e+00> : vector<8x16xf32>
    %24 = tpu.matmul %21, %23, %cst_21 {dimension_numbers = #tpu.dot_dimension_numbers<[1], [0], [0], [1], [0, 0, 1, 1], [], []>} : vector<8x256xf32>, vector<256x16xf32>, vector<8x16xf32> -> vector<8x16xf32>
    %c0_22 = arith.constant 0 : index
    %c0_23 = arith.constant 0 : index
    %c0_24 = arith.constant 0 : index
    %25 = vector.load %arg8[%c0_22, %c0_23, %c0_24] : memref<4x1x16xf32, #tpu.memory_space<vmem>>, vector<1x1x16xf32>
    %26 = vector.shape_cast %25 : vector<1x1x16xf32> to vector<1x16xf32>
    %27 = vector.broadcast %26 : vector<1x16xf32> to vector<8x16xf32>
    %28 = arith.addf %24, %27 : vector<8x16xf32>
    %c0_25 = arith.constant 0 : index
    %29 = memref.load %arg9[%c0_25] : memref<4xf32, #tpu.memory_space<smem>>
    %30 = vector.broadcast %29 : f32 to vector<8x16xf32>
    %31 = arith.mulf %0, %30 : vector<8x16xf32>
    %32 = arith.addf %28, %31 : vector<8x16xf32>
    %c0_26 = arith.constant 0 : index
    %33 = memref.load %arg10[%c0_26] : memref<4xf32, #tpu.memory_space<smem>>
    %34 = vector.broadcast %33 : f32 to vector<8x16xf32>
    %35 = arith.addf %32, %34 : vector<8x16xf32>
    %36 = arith.mulf %35, %35 : vector<8x16xf32>
    %c1 = arith.constant 1 : index
    %c0_27 = arith.constant 0 : index
    %c0_28 = arith.constant 0 : index
    %37 = vector.load %arg2[%c1, %c0_27, %c0_28] : memref<4x16x128xf32, #tpu.memory_space<vmem>>, vector<1x16x128xf32>
    %38 = vector.shape_cast %37 : vector<1x16x128xf32> to vector<16x128xf32>
    %cst_29 = arith.constant dense<0.000000e+00> : vector<8x128xf32>
    %39 = tpu.matmul %36, %38, %cst_29 {dimension_numbers = #tpu.dot_dimension_numbers<[1], [0], [0], [1], [0, 0, 1, 1], [], []>} : vector<8x16xf32>, vector<16x128xf32>, vector<8x128xf32> -> vector<8x128xf32>
    %c1_30 = arith.constant 1 : index
    %c0_31 = arith.constant 0 : index
    %c0_32 = arith.constant 0 : index
    %40 = vector.load %arg3[%c1_30, %c0_31, %c0_32] : memref<4x1x128xf32, #tpu.memory_space<vmem>>, vector<1x1x128xf32>
    %41 = vector.shape_cast %40 : vector<1x1x128xf32> to vector<1x128xf32>
    %42 = vector.broadcast %41 : vector<1x128xf32> to vector<8x128xf32>
    %43 = arith.addf %39, %42 : vector<8x128xf32>
    %44 = math.tanh %43 : vector<8x128xf32>
    %c1_33 = arith.constant 1 : index
    %c0_34 = arith.constant 0 : index
    %c0_35 = arith.constant 0 : index
    %45 = vector.load %arg4[%c1_33, %c0_34, %c0_35] : memref<4x128x256xf32, #tpu.memory_space<vmem>>, vector<1x128x256xf32>
    %46 = vector.shape_cast %45 : vector<1x128x256xf32> to vector<128x256xf32>
    %cst_36 = arith.constant dense<0.000000e+00> : vector<8x256xf32>
    %47 = tpu.matmul %44, %46, %cst_36 {dimension_numbers = #tpu.dot_dimension_numbers<[1], [0], [0], [1], [0, 0, 1, 1], [], []>} : vector<8x128xf32>, vector<128x256xf32>, vector<8x256xf32> -> vector<8x256xf32>
    %c1_37 = arith.constant 1 : index
    %c0_38 = arith.constant 0 : index
    %c0_39 = arith.constant 0 : index
    %48 = vector.load %arg5[%c1_37, %c0_38, %c0_39] : memref<4x1x256xf32, #tpu.memory_space<vmem>>, vector<1x1x256xf32>
    %49 = vector.shape_cast %48 : vector<1x1x256xf32> to vector<1x256xf32>
    %50 = vector.broadcast %49 : vector<1x256xf32> to vector<8x256xf32>
    %51 = arith.addf %47, %50 : vector<8x256xf32>
    %52 = math.tanh %51 : vector<8x256xf32>
    %c1_40 = arith.constant 1 : index
    %c0_41 = arith.constant 0 : index
    %c0_42 = arith.constant 0 : index
    %53 = vector.load %arg6[%c1_40, %c0_41, %c0_42] : memref<4x256x256xf32, #tpu.memory_space<vmem>>, vector<1x256x256xf32>
    %54 = vector.shape_cast %53 : vector<1x256x256xf32> to vector<256x256xf32>
    %cst_43 = arith.constant dense<0.000000e+00> : vector<8x256xf32>
    %55 = tpu.matmul %52, %54, %cst_43 {dimension_numbers = #tpu.dot_dimension_numbers<[1], [0], [0], [1], [0, 0, 1, 1], [], []>} : vector<8x256xf32>, vector<256x256xf32>, vector<8x256xf32> -> vector<8x256xf32>
    %56 = math.exp %55 : vector<8x256xf32>
    %c1_44 = arith.constant 1 : index
    %c0_45 = arith.constant 0 : index
    %c0_46 = arith.constant 0 : index
    %57 = vector.load %arg7[%c1_44, %c0_45, %c0_46] : memref<4x256x16xf32, #tpu.memory_space<vmem>>, vector<1x256x16xf32>
    %58 = vector.shape_cast %57 : vector<1x256x16xf32> to vector<256x16xf32>
    %cst_47 = arith.constant dense<0.000000e+00> : vector<8x16xf32>
    %59 = tpu.matmul %56, %58, %cst_47 {dimension_numbers = #tpu.dot_dimension_numbers<[1], [0], [0], [1], [0, 0, 1, 1], [], []>} : vector<8x256xf32>, vector<256x16xf32>, vector<8x16xf32> -> vector<8x16xf32>
    %c1_48 = arith.constant 1 : index
    %c0_49 = arith.constant 0 : index
    %c0_50 = arith.constant 0 : index
    %60 = vector.load %arg8[%c1_48, %c0_49, %c0_50] : memref<4x1x16xf32, #tpu.memory_space<vmem>>, vector<1x1x16xf32>
    %61 = vector.shape_cast %60 : vector<1x1x16xf32> to vector<1x16xf32>
    %62 = vector.broadcast %61 : vector<1x16xf32> to vector<8x16xf32>
    %63 = arith.addf %59, %62 : vector<8x16xf32>
    %c1_51 = arith.constant 1 : index
    %64 = memref.load %arg9[%c1_51] : memref<4xf32, #tpu.memory_space<smem>>
    %65 = vector.broadcast %64 : f32 to vector<8x16xf32>
    %66 = arith.mulf %35, %65 : vector<8x16xf32>
    %67 = arith.addf %63, %66 : vector<8x16xf32>
    %c1_52 = arith.constant 1 : index
    %68 = memref.load %arg10[%c1_52] : memref<4xf32, #tpu.memory_space<smem>>
    %69 = vector.broadcast %68 : f32 to vector<8x16xf32>
    %70 = arith.addf %67, %69 : vector<8x16xf32>
    %71 = arith.mulf %70, %70 : vector<8x16xf32>
    %c2 = arith.constant 2 : index
    %c0_53 = arith.constant 0 : index
    %c0_54 = arith.constant 0 : index
    %72 = vector.load %arg2[%c2, %c0_53, %c0_54] : memref<4x16x128xf32, #tpu.memory_space<vmem>>, vector<1x16x128xf32>
    %73 = vector.shape_cast %72 : vector<1x16x128xf32> to vector<16x128xf32>
    %cst_55 = arith.constant dense<0.000000e+00> : vector<8x128xf32>
    %74 = tpu.matmul %71, %73, %cst_55 {dimension_numbers = #tpu.dot_dimension_numbers<[1], [0], [0], [1], [0, 0, 1, 1], [], []>} : vector<8x16xf32>, vector<16x128xf32>, vector<8x128xf32> -> vector<8x128xf32>
    %c2_56 = arith.constant 2 : index
    %c0_57 = arith.constant 0 : index
    %c0_58 = arith.constant 0 : index
    %75 = vector.load %arg3[%c2_56, %c0_57, %c0_58] : memref<4x1x128xf32, #tpu.memory_space<vmem>>, vector<1x1x128xf32>
    %76 = vector.shape_cast %75 : vector<1x1x128xf32> to vector<1x128xf32>
    %77 = vector.broadcast %76 : vector<1x128xf32> to vector<8x128xf32>
    %78 = arith.addf %74, %77 : vector<8x128xf32>
    %79 = math.tanh %78 : vector<8x128xf32>
    %c2_59 = arith.constant 2 : index
    %c0_60 = arith.constant 0 : index
    %c0_61 = arith.constant 0 : index
    %80 = vector.load %arg4[%c2_59, %c0_60, %c0_61] : memref<4x128x256xf32, #tpu.memory_space<vmem>>, vector<1x128x256xf32>
    %81 = vector.shape_cast %80 : vector<1x128x256xf32> to vector<128x256xf32>
    %cst_62 = arith.constant dense<0.000000e+00> : vector<8x256xf32>
    %82 = tpu.matmul %79, %81, %cst_62 {dimension_numbers = #tpu.dot_dimension_numbers<[1], [0], [0], [1], [0, 0, 1, 1], [], []>} : vector<8x128xf32>, vector<128x256xf32>, vector<8x256xf32> -> vector<8x256xf32>
    %c2_63 = arith.constant 2 : index
    %c0_64 = arith.constant 0 : index
    %c0_65 = arith.constant 0 : index
    %83 = vector.load %arg5[%c2_63, %c0_64, %c0_65] : memref<4x1x256xf32, #tpu.memory_space<vmem>>, vector<1x1x256xf32>
    %84 = vector.shape_cast %83 : vector<1x1x256xf32> to vector<1x256xf32>
    %85 = vector.broadcast %84 : vector<1x256xf32> to vector<8x256xf32>
    %86 = arith.addf %82, %85 : vector<8x256xf32>
    %87 = math.tanh %86 : vector<8x256xf32>
    %c2_66 = arith.constant 2 : index
    %c0_67 = arith.constant 0 : index
    %c0_68 = arith.constant 0 : index
    %88 = vector.load %arg6[%c2_66, %c0_67, %c0_68] : memref<4x256x256xf32, #tpu.memory_space<vmem>>, vector<1x256x256xf32>
    %89 = vector.shape_cast %88 : vector<1x256x256xf32> to vector<256x256xf32>
    %cst_69 = arith.constant dense<0.000000e+00> : vector<8x256xf32>
    %90 = tpu.matmul %87, %89, %cst_69 {dimension_numbers = #tpu.dot_dimension_numbers<[1], [0], [0], [1], [0, 0, 1, 1], [], []>} : vector<8x256xf32>, vector<256x256xf32>, vector<8x256xf32> -> vector<8x256xf32>
    %91 = math.exp %90 : vector<8x256xf32>
    %c2_70 = arith.constant 2 : index
    %c0_71 = arith.constant 0 : index
    %c0_72 = arith.constant 0 : index
    %92 = vector.load %arg7[%c2_70, %c0_71, %c0_72] : memref<4x256x16xf32, #tpu.memory_space<vmem>>, vector<1x256x16xf32>
    %93 = vector.shape_cast %92 : vector<1x256x16xf32> to vector<256x16xf32>
    %cst_73 = arith.constant dense<0.000000e+00> : vector<8x16xf32>
    %94 = tpu.matmul %91, %93, %cst_73 {dimension_numbers = #tpu.dot_dimension_numbers<[1], [0], [0], [1], [0, 0, 1, 1], [], []>} : vector<8x256xf32>, vector<256x16xf32>, vector<8x16xf32> -> vector<8x16xf32>
    %c2_74 = arith.constant 2 : index
    %c0_75 = arith.constant 0 : index
    %c0_76 = arith.constant 0 : index
    %95 = vector.load %arg8[%c2_74, %c0_75, %c0_76] : memref<4x1x16xf32, #tpu.memory_space<vmem>>, vector<1x1x16xf32>
    %96 = vector.shape_cast %95 : vector<1x1x16xf32> to vector<1x16xf32>
    %97 = vector.broadcast %96 : vector<1x16xf32> to vector<8x16xf32>
    %98 = arith.addf %94, %97 : vector<8x16xf32>
    %c2_77 = arith.constant 2 : index
    %99 = memref.load %arg9[%c2_77] : memref<4xf32, #tpu.memory_space<smem>>
    %100 = vector.broadcast %99 : f32 to vector<8x16xf32>
    %101 = arith.mulf %70, %100 : vector<8x16xf32>
    %102 = arith.addf %98, %101 : vector<8x16xf32>
    %c2_78 = arith.constant 2 : index
    %103 = memref.load %arg10[%c2_78] : memref<4xf32, #tpu.memory_space<smem>>
    %104 = vector.broadcast %103 : f32 to vector<8x16xf32>
    %105 = arith.addf %102, %104 : vector<8x16xf32>
    %106 = arith.mulf %105, %105 : vector<8x16xf32>
    %c3 = arith.constant 3 : index
    %c0_79 = arith.constant 0 : index
    %c0_80 = arith.constant 0 : index
    %107 = vector.load %arg2[%c3, %c0_79, %c0_80] : memref<4x16x128xf32, #tpu.memory_space<vmem>>, vector<1x16x128xf32>
    %108 = vector.shape_cast %107 : vector<1x16x128xf32> to vector<16x128xf32>
    %cst_81 = arith.constant dense<0.000000e+00> : vector<8x128xf32>
    %109 = tpu.matmul %106, %108, %cst_81 {dimension_numbers = #tpu.dot_dimension_numbers<[1], [0], [0], [1], [0, 0, 1, 1], [], []>} : vector<8x16xf32>, vector<16x128xf32>, vector<8x128xf32> -> vector<8x128xf32>
    %c3_82 = arith.constant 3 : index
    %c0_83 = arith.constant 0 : index
    %c0_84 = arith.constant 0 : index
    %110 = vector.load %arg3[%c3_82, %c0_83, %c0_84] : memref<4x1x128xf32, #tpu.memory_space<vmem>>, vector<1x1x128xf32>
    %111 = vector.shape_cast %110 : vector<1x1x128xf32> to vector<1x128xf32>
    %112 = vector.broadcast %111 : vector<1x128xf32> to vector<8x128xf32>
    %113 = arith.addf %109, %112 : vector<8x128xf32>
    %114 = math.tanh %113 : vector<8x128xf32>
    %c3_85 = arith.constant 3 : index
    %c0_86 = arith.constant 0 : index
    %c0_87 = arith.constant 0 : index
    %115 = vector.load %arg4[%c3_85, %c0_86, %c0_87] : memref<4x128x256xf32, #tpu.memory_space<vmem>>, vector<1x128x256xf32>
    %116 = vector.shape_cast %115 : vector<1x128x256xf32> to vector<128x256xf32>
    %cst_88 = arith.constant dense<0.000000e+00> : vector<8x256xf32>
    %117 = tpu.matmul %114, %116, %cst_88 {dimension_numbers = #tpu.dot_dimension_numbers<[1], [0], [0], [1], [0, 0, 1, 1], [], []>} : vector<8x128xf32>, vector<128x256xf32>, vector<8x256xf32> -> vector<8x256xf32>
    %c3_89 = arith.constant 3 : index
    %c0_90 = arith.constant 0 : index
    %c0_91 = arith.constant 0 : index
    %118 = vector.load %arg5[%c3_89, %c0_90, %c0_91] : memref<4x1x256xf32, #tpu.memory_space<vmem>>, vector<1x1x256xf32>
    %119 = vector.shape_cast %118 : vector<1x1x256xf32> to vector<1x256xf32>
    %120 = vector.broadcast %119 : vector<1x256xf32> to vector<8x256xf32>
    %121 = arith.addf %117, %120 : vector<8x256xf32>
    %122 = math.tanh %121 : vector<8x256xf32>
    %c3_92 = arith.constant 3 : index
    %c0_93 = arith.constant 0 : index
    %c0_94 = arith.constant 0 : index
    %123 = vector.load %arg6[%c3_92, %c0_93, %c0_94] : memref<4x256x256xf32, #tpu.memory_space<vmem>>, vector<1x256x256xf32>
    %124 = vector.shape_cast %123 : vector<1x256x256xf32> to vector<256x256xf32>
    %cst_95 = arith.constant dense<0.000000e+00> : vector<8x256xf32>
    %125 = tpu.matmul %122, %124, %cst_95 {dimension_numbers = #tpu.dot_dimension_numbers<[1], [0], [0], [1], [0, 0, 1, 1], [], []>} : vector<8x256xf32>, vector<256x256xf32>, vector<8x256xf32> -> vector<8x256xf32>
    %126 = math.exp %125 : vector<8x256xf32>
    %c3_96 = arith.constant 3 : index
    %c0_97 = arith.constant 0 : index
    %c0_98 = arith.constant 0 : index
    %127 = vector.load %arg7[%c3_96, %c0_97, %c0_98] : memref<4x256x16xf32, #tpu.memory_space<vmem>>, vector<1x256x16xf32>
    %128 = vector.shape_cast %127 : vector<1x256x16xf32> to vector<256x16xf32>
    %cst_99 = arith.constant dense<0.000000e+00> : vector<8x16xf32>
    %129 = tpu.matmul %126, %128, %cst_99 {dimension_numbers = #tpu.dot_dimension_numbers<[1], [0], [0], [1], [0, 0, 1, 1], [], []>} : vector<8x256xf32>, vector<256x16xf32>, vector<8x16xf32> -> vector<8x16xf32>
    %c3_100 = arith.constant 3 : index
    %c0_101 = arith.constant 0 : index
    %c0_102 = arith.constant 0 : index
    %130 = vector.load %arg8[%c3_100, %c0_101, %c0_102] : memref<4x1x16xf32, #tpu.memory_space<vmem>>, vector<1x1x16xf32>
    %131 = vector.shape_cast %130 : vector<1x1x16xf32> to vector<1x16xf32>
    %132 = vector.broadcast %131 : vector<1x16xf32> to vector<8x16xf32>
    %133 = arith.addf %129, %132 : vector<8x16xf32>
    %c3_103 = arith.constant 3 : index
    %134 = memref.load %arg9[%c3_103] : memref<4xf32, #tpu.memory_space<smem>>
    %135 = vector.broadcast %134 : f32 to vector<8x16xf32>
    %136 = arith.mulf %105, %135 : vector<8x16xf32>
    %137 = arith.addf %133, %136 : vector<8x16xf32>
    %c3_104 = arith.constant 3 : index
    %138 = memref.load %arg10[%c3_104] : memref<4xf32, #tpu.memory_space<smem>>
    %139 = vector.broadcast %138 : f32 to vector<8x16xf32>
    %140 = arith.addf %137, %139 : vector<8x16xf32>
    %c0_105 = arith.constant 0 : index
    %c0_106 = arith.constant 0 : index
    %141 = vector.load %arg11[%c0_105, %c0_106] : memref<8x16xf32, #tpu.memory_space<vmem>>, vector<8x16xf32>
    tpu.vector_store %arg11[%c0_105, %c0_106], %140 {strides = array<i32>} : memref<8x16xf32, #tpu.memory_space<vmem>>, vector<8x16xf32>,
    return
  }
  func.func @transform_0(%arg0: i32) -> (i32, i32) {
    %c0_i32 = arith.constant 0 : i32
    %c0_i32_0 = arith.constant 0 : i32
    return %arg0, %c0_i32 : i32, i32
  }
  func.func @transform_1(%arg0: i32) -> (i32, i32, i32) {
    %c0_i32 = arith.constant 0 : i32
    %c0_i32_0 = arith.constant 0 : i32
    %c0_i32_1 = arith.constant 0 : i32
    %c0_i32_2 = arith.constant 0 : i32
    return %c0_i32, %c0_i32_0, %c0_i32_1 : i32, i32, i32
  }
  func.func @transform_2(%arg0: i32) -> (i32, i32, i32) {
    %c0_i32 = arith.constant 0 : i32
    %c0_i32_0 = arith.constant 0 : i32
    %c0_i32_1 = arith.constant 0 : i32
    %c0_i32_2 = arith.constant 0 : i32
    return %c0_i32, %c0_i32_0, %c0_i32_1 : i32, i32, i32
  }
  func.func @transform_3(%arg0: i32) -> (i32, i32, i32) {
    %c0_i32 = arith.constant 0 : i32
    %c0_i32_0 = arith.constant 0 : i32
    %c0_i32_1 = arith.constant 0 : i32
    %c0_i32_2 = arith.constant 0 : i32
    return %c0_i32, %c0_i32_0, %c0_i32_1 : i32, i32, i32
  }
  func.func @transform_4(%arg0: i32) -> (i32, i32, i32) {
    %c0_i32 = arith.constant 0 : i32
    %c0_i32_0 = arith.constant 0 : i32
    %c0_i32_1 = arith.constant 0 : i32
    %c0_i32_2 = arith.constant 0 : i32
    return %c0_i32, %c0_i32_0, %c0_i32_1 : i32, i32, i32
  }
  func.func @transform_5(%arg0: i32) -> (i32, i32, i32) {
    %c0_i32 = arith.constant 0 : i32
    %c0_i32_0 = arith.constant 0 : i32
    %c0_i32_1 = arith.constant 0 : i32
    %c0_i32_2 = arith.constant 0 : i32
    return %c0_i32, %c0_i32_0, %c0_i32_1 : i32, i32, i32
  }
  func.func @transform_6(%arg0: i32) -> (i32, i32, i32) {
    %c0_i32 = arith.constant 0 : i32
    %c0_i32_0 = arith.constant 0 : i32
    %c0_i32_1 = arith.constant 0 : i32
    %c0_i32_2 = arith.constant 0 : i32
    return %c0_i32, %c0_i32_0, %c0_i32_1 : i32, i32, i32
  }
  func.func @transform_7(%arg0: i32) -> (i32, i32, i32) {
    %c0_i32 = arith.constant 0 : i32
    %c0_i32_0 = arith.constant 0 : i32
    %c0_i32_1 = arith.constant 0 : i32
    %c0_i32_2 = arith.constant 0 : i32
    return %c0_i32, %c0_i32_0, %c0_i32_1 : i32, i32, i32
  }
  func.func @transform_8(%arg0: i32) -> i32 {
    %c0_i32 = arith.constant 0 : i32
    %c0_i32_0 = arith.constant 0 : i32
    return %c0_i32 : i32
  }
  func.func @transform_9(%arg0: i32) -> i32 {
    %c0_i32 = arith.constant 0 : i32
    %c0_i32_0 = arith.constant 0 : i32
    return %c0_i32 : i32
  }
  func.func @transform_10(%arg0: i32) -> (i32, i32) {
    %c0_i32 = arith.constant 0 : i32
    %c0_i32_0 = arith.constant 0 : i32
    return %arg0, %c0_i32 : i32, i32
  }
}

</mosaic_0001>

<llo_original>
// kernel: tpu_custom_call.1
$region0: #{tpu_custom_call.1}
  #allocation0 [shape = 'u32[]', space=smem, size = 0x4, offset = 0x4, fixed_abs, tag = 'smem constant byte address 0x4 - core index']
  #allocation1 [shape = 'u32[72,128]{1,0:T(1,128)}', space=vmem, size = 0x9000, scoped, tag = 'internal scratch']
  %s0 = inlined_call_operand.vmem [shape: f32[8,16], index: 0, kind: input, shape index: {}]
  %s1 = inlined_call_operand.vmem [shape: f32[4,16,128], index: 1, kind: input, shape index: {}]
  %s2 = inlined_call_operand.vmem [shape: f32[4,1,128], index: 2, kind: input, shape index: {}]
  %s3 = inlined_call_operand.vmem [shape: f32[4,128,256], index: 3, kind: input, shape index: {}]
  %s4 = inlined_call_operand.vmem [shape: f32[4,1,256], index: 4, kind: input, shape index: {}]
  %s5 = inlined_call_operand.hbm [shape: f32[4,256,256], index: 5, kind: input, shape index: {}]
  %s6 = inlined_call_operand.vmem [shape: f32[4,256,16], index: 6, kind: input, shape index: {}]
  %s7 = inlined_call_operand.vmem [shape: f32[4,1,16], index: 7, kind: input, shape index: {}]
  %s8 = inlined_call_operand.vmem [shape: f32[4], index: 8, kind: input, shape index: {}]
  %s9 = inlined_call_operand.vmem [shape: f32[4], index: 9, kind: input, shape index: {}]
  %s10 = inlined_call_operand.hbm [shape: f32[8,16], index: 10, kind: output, shape index: {}]
  %s11 = sld [smem:[#allocation0]]
  $region62: #{tpu_custom_call.1} parent=0
    _
  %s13 = ssub.s32 1, %s11
  %s14 = scalar_select 0, %s13, %s11
  $region1: #{tpu_custom_call.1} parent=0
    #allocation2 [shape = 'u8[1048576]{0}', space=vmem, size = 0x100000, scoped, tag = 'input window, operand 5, single buffered']
    #allocation3 [shape = 's32[1]{0}', space=sflag, size = 0x4, scoped, tag = 'scoped memory for tpu_custom_call.1']
    #allocation4 [shape = 's32[1]{0}', space=sflag, size = 0x4, scoped, tag = 'scoped memory for tpu_custom_call.1']
    #allocation5 [shape = 's32[1]{0}', space=sflag, size = 0x4, scoped, tag = 'scoped memory for tpu_custom_call.1']
    #allocation6 [shape = 'u8[512]{0}', space=smem, size = 0x200, scoped, tag = 'input window, operand 8, single buffered']
    #allocation7 [shape = 'u8[512]{0}', space=smem, size = 0x200, scoped, tag = 'input window, operand 9, single buffered']
    #allocation8 [shape = 's32[1]{0}', space=sflag, size = 0x4, scoped, tag = 'scoped memory for tpu_custom_call.1']
    #allocation9 [shape = 'u8[4096]{0}', space=vmem, size = 0x1000, scoped, tag = 'output window, operand 0, single buffered']
    %15 = vsyncpa [#allocation3], 0
    %16 = vsyncpa [#allocation5], 0
    %17 = vsyncpa [#allocation8], 0
    %18 = vsyncpa [#allocation4], 0
    // Predicated region
    $region2: #{tpu_custom_call.1} parent=1 // pred_check
      _
    $region3: #{tpu_custom_call.1} parent=1 // pred_check_branch
      %20 = sbr.rel (0) target = $region5
    $region4: #{tpu_custom_call.1} parent=1 // pred_region
      _
    $region5: #{tpu_custom_call.1} parent=1 // pred_fallthru
      _
    // Predicated region
    $region6: #{tpu_custom_call.1} parent=1 // pred_check
      _
    $region7: #{tpu_custom_call.1} parent=1 // pred_check_branch
      %22 = sbr.rel (0) target = $region9
    $region8: #{tpu_custom_call.1} parent=1 // pred_region
      _
    $region9: #{tpu_custom_call.1} parent=1 // pred_fallthru
      _
    // Predicated region
    $region10: #{tpu_custom_call.1} parent=1 // pred_check
      _
    $region11: #{tpu_custom_call.1} parent=1 // pred_check_branch
      %24 = sbr.rel (0) target = $region13
    $region12: #{tpu_custom_call.1} parent=1 // pred_region
      _
    $region13: #{tpu_custom_call.1} parent=1 // pred_fallthru
      _
    // Predicated region
    $region14: #{tpu_custom_call.1} parent=1 // pred_check
      _
    $region15: #{tpu_custom_call.1} parent=1 // pred_check_branch
      %26 = sbr.rel (0) target = $region17
    $region16: #{tpu_custom_call.1} parent=1 // pred_region
      _
    $region17: #{tpu_custom_call.1} parent=1 // pred_fallthru
      _
    // Predicated region
    $region18: #{tpu_custom_call.1} parent=1 // pred_check
      _
    $region19: #{tpu_custom_call.1} parent=1 // pred_check_branch
      %28 = sbr.rel (0) target = $region21
    $region20: #{tpu_custom_call.1} parent=1 // pred_region
      _
    $region21: #{tpu_custom_call.1} parent=1 // pred_fallthru
      _
    // Predicated region
    $region22: #{tpu_custom_call.1} parent=1 // pred_check
      _
    $region23: #{tpu_custom_call.1} parent=1 // pred_check_branch
      %30 = sbr.rel (0) target = $region25
    $region24: #{tpu_custom_call.1} parent=1 // pred_region
      %32 = vsyncadd [#allocation3], 0
      %s33 = sshll.u32 %s5, 4
      %s34 = int_to_ptr.hbm [resolvable:$true] %s33
      %s35 = sshll.u32 [#allocation2], 4
      %s36 = int_to_ptr.vmem [resolvable:$true] %s35
      %41 = dma.hbm_to_vmem [thread:$0]  %s34, 32768, %s36, [#allocation3], 256, 256, 16
    $region25: #{tpu_custom_call.1} parent=1 // pred_fallthru
      _
    // Predicated region
    $region26: #{tpu_custom_call.1} parent=1 // pred_check
      _
    $region27: #{tpu_custom_call.1} parent=1 // pred_check_branch
      %43 = sbr.rel (0) target = $region29
    $region28: #{tpu_custom_call.1} parent=1 // pred_region
      _
    $region29: #{tpu_custom_call.1} parent=1 // pred_fallthru
      _
    // Predicated region
    $region30: #{tpu_custom_call.1} parent=1 // pred_check
      _
    $region31: #{tpu_custom_call.1} parent=1 // pred_check_branch
      %45 = sbr.rel (0) target = $region33
    $region32: #{tpu_custom_call.1} parent=1 // pred_region
      _
    $region33: #{tpu_custom_call.1} parent=1 // pred_fallthru
      _
    // Predicated region
    $region34: #{tpu_custom_call.1} parent=1 // pred_check
      _
    $region35: #{tpu_custom_call.1} parent=1 // pred_check_branch
      %47 = sbr.rel (0) target = $region37
    $region36: #{tpu_custom_call.1} parent=1 // pred_region
      %49 = vsyncadd [#allocation5], 0
      %s51 = sshll.u32 %s8, 4
      %s52 = int_to_ptr.vmem [resolvable:$true] %s51
      %54 = dma.vmem_to_smem %s52, 16, [#allocation6], [#allocation5]
    $region37: #{tpu_custom_call.1} parent=1 // pred_fallthru
      _
    // Predicated region
    $region38: #{tpu_custom_call.1} parent=1 // pred_check
      _
    $region39: #{tpu_custom_call.1} parent=1 // pred_check_branch
      %56 = sbr.rel (0) target = $region41
    $region40: #{tpu_custom_call.1} parent=1 // pred_region
      %58 = vsyncadd [#allocation8], 0
      %s60 = sshll.u32 %s9, 4
      %s61 = int_to_ptr.vmem [resolvable:$true] %s60
      %63 = dma.vmem_to_smem %s61, 16, [#allocation7], [#allocation8]
    $region41: #{tpu_custom_call.1} parent=1 // pred_fallthru
      _
    // Predicated region
    $region42: #{tpu_custom_call.1} parent=1 // pred_check
      _
    $region43: #{tpu_custom_call.1} parent=1 // pred_check_branch
      %65 = sbr.rel (0) target = $region45
    $region44: #{tpu_custom_call.1} parent=1 // pred_region
      %67 = dma.done [#allocation3], 32768
    $region45: #{tpu_custom_call.1} parent=1 // pred_fallthru
      _
    // Predicated region
    $region46: #{tpu_custom_call.1} parent=1 // pred_check
      _
    $region47: #{tpu_custom_call.1} parent=1 // pred_check_branch
      %69 = sbr.rel (0) target = $region49
    $region48: #{tpu_custom_call.1} parent=1 // pred_region
      %71 = dma.done [#allocation5], 16
    $region49: #{tpu_custom_call.1} parent=1 // pred_fallthru
      _
    // Predicated region
    $region50: #{tpu_custom_call.1} parent=1 // pred_check
      _
    $region51: #{tpu_custom_call.1} parent=1 // pred_check_branch
      %73 = sbr.rel (0) target = $region53
    $region52: #{tpu_custom_call.1} parent=1 // pred_region
      %75 = dma.done [#allocation8], 16
    $region53: #{tpu_custom_call.1} parent=1 // pred_fallthru
      _
    %76 = sfence
    %v77 = vld [vmem:[%s0] sm:$0xff]
    %v78 = vmul.f32 %v77, %v77
    %v79 = vld [vmem:[%s1] sm:$0xff]
    %v80 = vld [vmem:[%s1 + $0x8] sm:$0xff]
    %v81 = vld [vmem:[%s2] sm:$0x1]
    %v83 = vperm.slane %v81, 0
    %vm85 = vcmask 130048
    %v87 = vsel %vm85, %v78, 0
    %89 = vmatpush.msra.mxu0 0.0
    %90 = vmatpush.msra.mxu0 0.0
    %91 = vmatpush.msra.mxu0 0.0
    %92 = vmatpush.msra.mxu0 0.0
    %93 = vmatpush.msra.mxu0 0.0
    %94 = vmatpush.msra.mxu0 0.0
    %95 = vmatpush.msra.mxu0 0.0
    %96 = vmatpush.msra.mxu0 0.0
    %97 = vmatpush.msra.mxu0 0.0
    %98 = vmatpush.msra.mxu0 0.0
    %99 = vmatpush.msra.mxu0 0.0
    %100 = vmatpush.msra.mxu0 0.0
    %101 = vmatpush.msra.mxu0 0.0
    %102 = vmatpush.msra.mxu0 0.0
    %103 = vmatpush.msra.mxu0 %v80
    %104 = vmatpush.msra.mxu0 %v79
    %105 = vmatmul.f32.gmra.mxu0 %v87
    %v106 = vpop.f32.mrf.mxu0
    %v107 = vadd.f32 %v83, %v106
    %108 = vdwg.mxu0
    %v109 = vtanh.pop %v107
    %v110 = vld [vmem:[%s3] sm:$0xff]
    %v111 = vld [vmem:[%s3 + $0x8] sm:$0xff]
    %v112 = vld [vmem:[%s3 + $0x10] sm:$0xff]
    %v113 = vld [vmem:[%s3 + $0x18] sm:$0xff]
    %v114 = vld [vmem:[%s3 + $0x20] sm:$0xff]
    %v115 = vld [vmem:[%s3 + $0x28] sm:$0xff]
    %v116 = vld [vmem:[%s3 + $0x30] sm:$0xff]
    %v117 = vld [vmem:[%s3 + $0x38] sm:$0xff]
    %v118 = vld [vmem:[%s3 + $0x40] sm:$0xff]
    %v119 = vld [vmem:[%s3 + $0x48] sm:$0xff]
    %v120 = vld [vmem:[%s3 + $0x50] sm:$0xff]
    %v121 = vld [vmem:[%s3 + $0x58] sm:$0xff]
    %v122 = vld [vmem:[%s3 + $0x60] sm:$0xff]
    %v123 = vld [vmem:[%s3 + $0x68] sm:$0xff]
    %v124 = vld [vmem:[%s3 + $0x70] sm:$0xff]
    %v125 = vld [vmem:[%s3 + $0x78] sm:$0xff]
    %v126 = vld [vmem:[%s3 + $0x80] sm:$0xff]
    %v127 = vld [vmem:[%s3 + $0x88] sm:$0xff]
    %v128 = vld [vmem:[%s3 + $0x90] sm:$0xff]
    %v129 = vld [vmem:[%s3 + $0x98] sm:$0xff]
    %v130 = vld [vmem:[%s3 + $0xa0] sm:$0xff]
    %v131 = vld [vmem:[%s3 + $0xa8] sm:$0xff]
    %v132 = vld [vmem:[%s3 + $0xb0] sm:$0xff]
    %v133 = vld [vmem:[%s3 + $0xb8] sm:$0xff]
    %v134 = vld [vmem:[%s3 + $0xc0] sm:$0xff]
    %v135 = vld [vmem:[%s3 + $0xc8] sm:$0xff]
    %v136 = vld [vmem:[%s3 + $0xd0] sm:$0xff]
    %v137 = vld [vmem:[%s3 + $0xd8] sm:$0xff]
    %v138 = vld [vmem:[%s3 + $0xe0] sm:$0xff]
    %v139 = vld [vmem:[%s3 + $0xe8] sm:$0xff]
    %v140 = vld [vmem:[%s3 + $0xf0] sm:$0xff]
    %v141 = vld [vmem:[%s3 + $0xf8] sm:$0xff]
    %v142 = vld [vmem:[%s4] sm:$0x3]
    %v144 = vperm.slane %v142, 0
    %v145 = vperm.slane %v142, 1
    %148 = vmatpush.msra.mxu0 %v140
    %149 = vmatpush.msra.mxu0 %v138
    %150 = vmatpush.msra.mxu0 %v136
    %151 = vmatpush.msra.mxu0 %v134
    %152 = vmatpush.msra.mxu0 %v132
    %153 = vmatpush.msra.mxu0 %v130
    %154 = vmatpush.msra.mxu0 %v128
    %155 = vmatpush.msra.mxu0 %v126
    %156 = vmatpush.msra.mxu0 %v124
    %157 = vmatpush.msra.mxu0 %v122
    %158 = vmatpush.msra.mxu0 %v120
    %159 = vmatpush.msra.mxu0 %v118
    %160 = vmatpush.msra.mxu0 %v116
    %161 = vmatpush.msra.mxu0 %v114
    %162 = vmatpush.msra.mxu0 %v112
    %163 = vmatpush.msra.mxu0 %v110
    %164 = vmatmul.f32.gmra.mxu0 %v109
    %v165 = vpop.f32.mrf.mxu0
    %v166 = vadd.f32 %v144, %v165
    %167 = vdwg.mxu0
    %168 = vmatpush.msra.mxu0 %v141
    %169 = vmatpush.msra.mxu0 %v139
    %170 = vmatpush.msra.mxu0 %v137
    %171 = vmatpush.msra.mxu0 %v135
    %172 = vmatpush.msra.mxu0 %v133
    %173 = vmatpush.msra.mxu0 %v131
    %174 = vmatpush.msra.mxu0 %v129
    %175 = vmatpush.msra.mxu0 %v127
    %176 = vmatpush.msra.mxu0 %v125
    %177 = vmatpush.msra.mxu0 %v123
    %178 = vmatpush.msra.mxu0 %v121
    %179 = vmatpush.msra.mxu0 %v119
    %180 = vmatpush.msra.mxu0 %v117
    %181 = vmatpush.msra.mxu0 %v115
    %182 = vmatpush.msra.mxu0 %v113
    %183 = vmatpush.msra.mxu0 %v111
    %184 = vmatmul.f32.gmra.mxu0 %v109
    %v185 = vpop.f32.mrf.mxu0
    %v186 = vadd.f32 %v145, %v185
    %187 = vdwg.mxu0
    %v188 = vtanh.pop %v166
    %v189 = vtanh.pop %v186
    %v190 = vld [vmem:[#allocation2] sm:$0xff]
    %v191 = vld [vmem:[#allocation2 + $0x8] sm:$0xff]
    %v192 = vld [vmem:[#allocation2 + $0x10] sm:$0xff]
    %v193 = vld [vmem:[#allocation2 + $0x18] sm:$0xff]
    %v194 = vld [vmem:[#allocation2 + $0x20] sm:$0xff]
    %v195 = vld [vmem:[#allocation2 + $0x28] sm:$0xff]
    %v196 = vld [vmem:[#allocation2 + $0x30] sm:$0xff]
    %v197 = vld [vmem:[#allocation2 + $0x38] sm:$0xff]
    %v198 = vld [vmem:[#allocation2 + $0x40] sm:$0xff]
    %v199 = vld [vmem:[#allocation2 + $0x48] sm:$0xff]
    %v200 = vld [vmem:[#allocation2 + $0x50] sm:$0xff]
    %v201 = vld [vmem:[#allocation2 + $0x58] sm:$0xff]
    %v202 = vld [vmem:[#allocation2 + $0x60] sm:$0xff]
    %v203 = vld [vmem:[#allocation2 + $0x68] sm:$0xff]
    %v204 = vld [vmem:[#allocation2 + $0x70] sm:$0xff]
    %v205 = vld [vmem:[#allocation2 + $0x78] sm:$0xff]
    %v206 = vld [vmem:[#allocation2 + $0x80] sm:$0xff]
    %v207 = vld [vmem:[#allocation2 + $0x88] sm:$0xff]
    %v208 = vld [vmem:[#allocation2 + $0x90] sm:$0xff]
    %v209 = vld [vmem:[#allocation2 + $0x98] sm:$0xff]
    %v210 = vld [vmem:[#allocation2 + $0xa0] sm:$0xff]
    %v211 = vld [vmem:[#allocation2 + $0xa8] sm:$0xff]
    %v212 = vld [vmem:[#allocation2 + $0xb0] sm:$0xff]
    %v213 = vld [vmem:[#allocation2 + $0xb8] sm:$0xff]
    %v214 = vld [vmem:[#allocation2 + $0xc0] sm:$0xff]
    %v215 = vld [vmem:[#allocation2 + $0xc8] sm:$0xff]
    %v216 = vld [vmem:[#allocation2 + $0xd0] sm:$0xff]
    %v217 = vld [vmem:[#allocation2 + $0xd8] sm:$0xff]
    %v218 = vld [vmem:[#allocation2 + $0xe0] sm:$0xff]
    %v219 = vld [vmem:[#allocation2 + $0xe8] sm:$0xff]
    %v220 = vld [vmem:[#allocation2 + $0xf0] sm:$0xff]
    %v221 = vld [vmem:[#allocation2 + $0xf8] sm:$0xff]
    %v222 = vld [vmem:[#allocation2 + $0x100] sm:$0xff]
    %v223 = vld [vmem:[#allocation2 + $0x108] sm:$0xff]
    %v224 = vld [vmem:[#allocation2 + $0x110] sm:$0xff]
    %v225 = vld [vmem:[#allocation2 + $0x118] sm:$0xff]
    %v226 = vld [vmem:[#allocation2 + $0x120] sm:$0xff]
    %v227 = vld [vmem:[#allocation2 + $0x128] sm:$0xff]
    %v228 = vld [vmem:[#allocation2 + $0x130] sm:$0xff]
    %v229 = vld [vmem:[#allocation2 + $0x138] sm:$0xff]
    %v230 = vld [vmem:[#allocation2 + $0x140] sm:$0xff]
    %v231 = vld [vmem:[#allocation2 + $0x148] sm:$0xff]
    %v232 = vld [vmem:[#allocation2 + $0x150] sm:$0xff]
    %v233 = vld [vmem:[#allocation2 + $0x158] sm:$0xff]
    %v234 = vld [vmem:[#allocation2 + $0x160] sm:$0xff]
    %v235 = vld [vmem:[#allocation2 + $0x168] sm:$0xff]
    %v236 = vld [vmem:[#allocation2 + $0x170] sm:$0xff]
    %v237 = vld [vmem:[#allocation2 + $0x178] sm:$0xff]
    %v238 = vld [vmem:[#allocation2 + $0x180] sm:$0xff]
    %v239 = vld [vmem:[#allocation2 + $0x188] sm:$0xff]
    %v240 = vld [vmem:[#allocation2 + $0x190] sm:$0xff]
    %v241 = vld [vmem:[#allocation2 + $0x198] sm:$0xff]
    %v242 = vld [vmem:[#allocation2 + $0x1a0] sm:$0xff]
    %v243 = vld [vmem:[#allocation2 + $0x1a8] sm:$0xff]
    %v244 = vld [vmem:[#allocation2 + $0x1b0] sm:$0xff]
    %v245 = vld [vmem:[#allocation2 + $0x1b8] sm:$0xff]
    %v246 = vld [vmem:[#allocation2 + $0x1c0] sm:$0xff]
    %v247 = vld [vmem:[#allocation2 + $0x1c8] sm:$0xff]
    %v248 = vld [vmem:[#allocation2 + $0x1d0] sm:$0xff]
    %v249 = vld [vmem:[#allocation2 + $0x1d8] sm:$0xff]
    %v250 = vld [vmem:[#allocation2 + $0x1e0] sm:$0xff]
    %v251 = vld [vmem:[#allocation2 + $0x1e8] sm:$0xff]
    %v252 = vld [vmem:[#allocation2 + $0x1f0] sm:$0xff]
    %v253 = vld [vmem:[#allocation2 + $0x1f8] sm:$0xff]
    %254 = vmatpush.msra.mxu0 %v220
    %255 = vmatpush.msra.mxu0 %v218
    %256 = vmatpush.msra.mxu0 %v216
    %257 = vmatpush.msra.mxu0 %v214
    %258 = vmatpush.msra.mxu0 %v212
    %259 = vmatpush.msra.mxu0 %v210
    %260 = vmatpush.msra.mxu0 %v208
    %261 = vmatpush.msra.mxu0 %v206
    %262 = vmatpush.msra.mxu0 %v204
    %263 = vmatpush.msra.mxu0 %v202
    %264 = vmatpush.msra.mxu0 %v200
    %265 = vmatpush.msra.mxu0 %v198
    %266 = vmatpush.msra.mxu0 %v196
    %267 = vmatpush.msra.mxu0 %v194
    %268 = vmatpush.msra.mxu0 %v192
    %269 = vmatpush.msra.mxu0 %v190
    %270 = vmatmul.f32.gmra.mxu0 %v188
    %v271 = vpop.f32.mrf.mxu0
    %v272 = vadd.f32 0.0, %v271
    %273 = vdwg.mxu0
    %274 = vmatpush.msra.mxu0 %v252
    %275 = vmatpush.msra.mxu0 %v250
    %276 = vmatpush.msra.mxu0 %v248
    %277 = vmatpush.msra.mxu0 %v246
    %278 = vmatpush.msra.mxu0 %v244
    %279 = vmatpush.msra.mxu0 %v242
    %280 = vmatpush.msra.mxu0 %v240
    %281 = vmatpush.msra.mxu0 %v238
    %282 = vmatpush.msra.mxu0 %v236
    %283 = vmatpush.msra.mxu0 %v234
    %284 = vmatpush.msra.mxu0 %v232
    %285 = vmatpush.msra.mxu0 %v230
    %286 = vmatpush.msra.mxu0 %v228
    %287 = vmatpush.msra.mxu0 %v226
    %288 = vmatpush.msra.mxu0 %v224
    %289 = vmatpush.msra.mxu0 %v222
    %290 = vmatmul.f32.gmra.mxu0 %v189
    %v291 = vpop.f32.mrf.mxu0
    %v292 = vadd.f32 %v272, %v291
    %293 = vdwg.mxu0
    %294 = vmatpush.msra.mxu0 %v221
    %295 = vmatpush.msra.mxu0 %v219
    %296 = vmatpush.msra.mxu0 %v217
    %297 = vmatpush.msra.mxu0 %v215
    %298 = vmatpush.msra.mxu0 %v213
    %299 = vmatpush.msra.mxu0 %v211
    %300 = vmatpush.msra.mxu0 %v209
    %301 = vmatpush.msra.mxu0 %v207
    %302 = vmatpush.msra.mxu0 %v205
    %303 = vmatpush.msra.mxu0 %v203
    %304 = vmatpush.msra.mxu0 %v201
    %305 = vmatpush.msra.mxu0 %v199
    %306 = vmatpush.msra.mxu0 %v197
    %307 = vmatpush.msra.mxu0 %v195
    %308 = vmatpush.msra.mxu0 %v193
    %309 = vmatpush.msra.mxu0 %v191
    %310 = vmatmul.f32.gmra.mxu0 %v188
    %v311 = vpop.f32.mrf.mxu0
    %v312 = vadd.f32 0.0, %v311
    %313 = vdwg.mxu0
    %314 = vmatpush.msra.mxu0 %v253
    %315 = vmatpush.msra.mxu0 %v251
    %316 = vmatpush.msra.mxu0 %v249
    %317 = vmatpush.msra.mxu0 %v247
    %318 = vmatpush.msra.mxu0 %v245
    %319 = vmatpush.msra.mxu0 %v243
    %320 = vmatpush.msra.mxu0 %v241
    %321 = vmatpush.msra.mxu0 %v239
    %322 = vmatpush.msra.mxu0 %v237
    %323 = vmatpush.msra.mxu0 %v235
    %324 = vmatpush.msra.mxu0 %v233
    %325 = vmatpush.msra.mxu0 %v231
    %326 = vmatpush.msra.mxu0 %v229
    %327 = vmatpush.msra.mxu0 %v227
    %328 = vmatpush.msra.mxu0 %v225
    %329 = vmatpush.msra.mxu0 %v223
    %330 = vmatmul.f32.gmra.mxu0 %v189
    %v331 = vpop.f32.mrf.mxu0
    %v332 = vadd.f32 %v312, %v331
    %333 = vdwg.mxu0
    %v334 = vmul.f32 %v292, 1.442695
    %v335 = vpow.pop %v334
    %v336 = vmul.f32 %v332, 1.442695
    %v337 = vpow.pop %v336
    %v338 = vld [vmem:[%s6] sm:$0xff]
    %v339 = vld [vmem:[%s6 + $0x8] sm:$0xff]
    %v340 = vld [vmem:[%s6 + $0x10] sm:$0xff]
    %v341 = vld [vmem:[%s6 + $0x18] sm:$0xff]
    %v342 = vld [vmem:[%s6 + $0x20] sm:$0xff]
    %v343 = vld [vmem:[%s6 + $0x28] sm:$0xff]
    %v344 = vld [vmem:[%s6 + $0x30] sm:$0xff]
    %v345 = vld [vmem:[%s6 + $0x38] sm:$0xff]
    %v346 = vld [vmem:[%s6 + $0x40] sm:$0xff]
    %v347 = vld [vmem:[%s6 + $0x48] sm:$0xff]
    %v348 = vld [vmem:[%s6 + $0x50] sm:$0xff]
    %v349 = vld [vmem:[%s6 + $0x58] sm:$0xff]
    %v350 = vld [vmem:[%s6 + $0x60] sm:$0xff]
    %v351 = vld [vmem:[%s6 + $0x68] sm:$0xff]
    %v352 = vld [vmem:[%s6 + $0x70] sm:$0xff]
    %v353 = vld [vmem:[%s6 + $0x78] sm:$0xff]
    %v354 = vld [vmem:[%s6 + $0x80] sm:$0xff]
    %v355 = vld [vmem:[%s6 + $0x88] sm:$0xff]
    %v356 = vld [vmem:[%s6 + $0x90] sm:$0xff]
    %v357 = vld [vmem:[%s6 + $0x98] sm:$0xff]
    %v358 = vld [vmem:[%s6 + $0xa0] sm:$0xff]
    %v359 = vld [vmem:[%s6 + $0xa8] sm:$0xff]
    %v360 = vld [vmem:[%s6 + $0xb0] sm:$0xff]
    %v361 = vld [vmem:[%s6 + $0xb8] sm:$0xff]
    %v362 = vld [vmem:[%s6 + $0xc0] sm:$0xff]
    %v363 = vld [vmem:[%s6 + $0xc8] sm:$0xff]
    %v364 = vld [vmem:[%s6 + $0xd0] sm:$0xff]
    %v365 = vld [vmem:[%s6 + $0xd8] sm:$0xff]
    %v366 = vld [vmem:[%s6 + $0xe0] sm:$0xff]
    %v367 = vld [vmem:[%s6 + $0xe8] sm:$0xff]
    %v368 = vld [vmem:[%s6 + $0xf0] sm:$0xff]
    %v369 = vld [vmem:[%s6 + $0xf8] sm:$0xff]
    %v370 = vld [vmem:[%s7] sm:$0x1]
    %v372 = vperm.slane %v370, 0
    %374 = vmatpush.msra.mxu0 %v353
    %375 = vmatpush.msra.mxu0 %v352
    %376 = vmatpush.msra.mxu0 %v351
    %377 = vmatpush.msra.mxu0 %v350
    %378 = vmatpush.msra.mxu0 %v349
    %379 = vmatpush.msra.mxu0 %v348
    %380 = vmatpush.msra.mxu0 %v347
    %381 = vmatpush.msra.mxu0 %v346
    %382 = vmatpush.msra.mxu0 %v345
    %383 = vmatpush.msra.mxu0 %v344
    %384 = vmatpush.msra.mxu0 %v343
    %385 = vmatpush.msra.mxu0 %v342
    %386 = vmatpush.msra.mxu0 %v341
    %387 = vmatpush.msra.mxu0 %v340
    %388 = vmatpush.msra.mxu0 %v339
    %389 = vmatpush.msra.mxu0 %v338
    %390 = vmatmul.f32.gmra.mxu0 %v335
    %v391 = vpop.f32.mrf.mxu0
    %v392 = vadd.f32 %v372, %v391
    %393 = vdwg.mxu0
    %394 = vmatpush.msra.mxu0 %v369
    %395 = vmatpush.msra.mxu0 %v368
    %396 = vmatpush.msra.mxu0 %v367
    %397 = vmatpush.msra.mxu0 %v366
    %398 = vmatpush.msra.mxu0 %v365
    %399 = vmatpush.msra.mxu0 %v364
    %400 = vmatpush.msra.mxu0 %v363
    %401 = vmatpush.msra.mxu0 %v362
    %402 = vmatpush.msra.mxu0 %v361
    %403 = vmatpush.msra.mxu0 %v360
    %404 = vmatpush.msra.mxu0 %v359
    %405 = vmatpush.msra.mxu0 %v358
    %406 = vmatpush.msra.mxu0 %v357
    %407 = vmatpush.msra.mxu0 %v356
    %408 = vmatpush.msra.mxu0 %v355
    %409 = vmatpush.msra.mxu0 %v354
    %410 = vmatmul.f32.gmra.mxu0 %v337
    %v411 = vpop.f32.mrf.mxu0
    %v412 = vadd.f32 %v392, %v411
    %413 = vdwg.mxu0
    %s414 = sld [smem:[#allocation6]]
    %v415 = vstv %s414
    %v416 = vmul.f32 %v77, %v415
    %v417 = vadd.f32 %v412, %v416
    %s418 = sld [smem:[#allocation7]]
    %v419 = vstv %s418
    %v420 = vadd.f32 %v417, %v419
    %v421 = vmul.f32 %v420, %v420
    %s422 = scalar_lea.vmem %s1, 16
    %v423 = vld [vmem:[%s422] sm:$0xff]
    %v424 = vld [vmem:[%s422 + $0x8] sm:$0xff]
    %s425 = scalar_lea.vmem %s2, 1
    %v426 = vld [vmem:[%s425] sm:$0x1]
    %v428 = vperm.slane %v426, 0
    %v431 = vsel %vm85, %v421, 0
    %433 = vmatpush.msra.mxu0 0.0
    %434 = vmatpush.msra.mxu0 0.0
    %435 = vmatpush.msra.mxu0 0.0
    %436 = vmatpush.msra.mxu0 0.0
    %437 = vmatpush.msra.mxu0 0.0
    %438 = vmatpush.msra.mxu0 0.0
    %439 = vmatpush.msra.mxu0 0.0
    %440 = vmatpush.msra.mxu0 0.0
    %441 = vmatpush.msra.mxu0 0.0
    %442 = vmatpush.msra.mxu0 0.0
    %443 = vmatpush.msra.mxu0 0.0
    %444 = vmatpush.msra.mxu0 0.0
    %445 = vmatpush.msra.mxu0 0.0
    %446 = vmatpush.msra.mxu0 0.0
    %447 = vmatpush.msra.mxu0 %v424
    %448 = vmatpush.msra.mxu0 %v423
    %449 = vmatmul.f32.gmra.mxu0 %v431
    %v450 = vpop.f32.mrf.mxu0
    %v451 = vadd.f32 %v428, %v450
    %452 = vdwg.mxu0
    %v453 = vtanh.pop %v451
    %s454 = scalar_lea.vmem %s3, 256
    %v455 = vld [vmem:[%s454] sm:$0xff]
    %v456 = vld [vmem:[%s454 + $0x8] sm:$0xff]
    %v457 = vld [vmem:[%s454 + $0x10] sm:$0xff]
    %v458 = vld [vmem:[%s454 + $0x18] sm:$0xff]
    %v459 = vld [vmem:[%s454 + $0x20] sm:$0xff]
    %v460 = vld [vmem:[%s454 + $0x28] sm:$0xff]
    %v461 = vld [vmem:[%s454 + $0x30] sm:$0xff]
    %v462 = vld [vmem:[%s454 + $0x38] sm:$0xff]
    %v463 = vld [vmem:[%s454 + $0x40] sm:$0xff]
    %v464 = vld [vmem:[%s454 + $0x48] sm:$0xff]
    %v465 = vld [vmem:[%s454 + $0x50] sm:$0xff]
    %v466 = vld [vmem:[%s454 + $0x58] sm:$0xff]
    %v467 = vld [vmem:[%s454 + $0x60] sm:$0xff]
    %v468 = vld [vmem:[%s454 + $0x68] sm:$0xff]
    %v469 = vld [vmem:[%s454 + $0x70] sm:$0xff]
    %v470 = vld [vmem:[%s454 + $0x78] sm:$0xff]
    %v471 = vld [vmem:[%s454 + $0x80] sm:$0xff]
    %v472 = vld [vmem:[%s454 + $0x88] sm:$0xff]
    %v473 = vld [vmem:[%s454 + $0x90] sm:$0xff]
    %v474 = vld [vmem:[%s454 + $0x98] sm:$0xff]
    %v475 = vld [vmem:[%s454 + $0xa0] sm:$0xff]
    %v476 = vld [vmem:[%s454 + $0xa8] sm:$0xff]
    %v477 = vld [vmem:[%s454 + $0xb0] sm:$0xff]
    %v478 = vld [vmem:[%s454 + $0xb8] sm:$0xff]
    %v479 = vld [vmem:[%s454 + $0xc0] sm:$0xff]
    %v480 = vld [vmem:[%s454 + $0xc8] sm:$0xff]
    %v481 = vld [vmem:[%s454 + $0xd0] sm:$0xff]
    %v482 = vld [vmem:[%s454 + $0xd8] sm:$0xff]
    %v483 = vld [vmem:[%s454 + $0xe0] sm:$0xff]
    %v484 = vld [vmem:[%s454 + $0xe8] sm:$0xff]
    %v485 = vld [vmem:[%s454 + $0xf0] sm:$0xff]
    %v486 = vld [vmem:[%s454 + $0xf8] sm:$0xff]
    %s487 = scalar_lea.vmem %s4, 2
    %v488 = vld [vmem:[%s487] sm:$0x3]
    %v490 = vperm.slane %v488, 0
    %v491 = vperm.slane %v488, 1
    %494 = vmatpush.msra.mxu0 %v485
    %495 = vmatpush.msra.mxu0 %v483
    %496 = vmatpush.msra.mxu0 %v481
    %497 = vmatpush.msra.mxu0 %v479
    %498 = vmatpush.msra.mxu0 %v477
    %499 = vmatpush.msra.mxu0 %v475
    %500 = vmatpush.msra.mxu0 %v473
    %501 = vmatpush.msra.mxu0 %v471
    %502 = vmatpush.msra.mxu0 %v469
    %503 = vmatpush.msra.mxu0 %v467
    %504 = vmatpush.msra.mxu0 %v465
    %505 = vmatpush.msra.mxu0 %v463
    %506 = vmatpush.msra.mxu0 %v461
    %507 = vmatpush.msra.mxu0 %v459
    %508 = vmatpush.msra.mxu0 %v457
    %509 = vmatpush.msra.mxu0 %v455
    %510 = vmatmul.f32.gmra.mxu0 %v453
    %v511 = vpop.f32.mrf.mxu0
    %v512 = vadd.f32 %v490, %v511
    %513 = vdwg.mxu0
    %514 = vmatpush.msra.mxu0 %v486
    %515 = vmatpush.msra.mxu0 %v484
    %516 = vmatpush.msra.mxu0 %v482
    %517 = vmatpush.msra.mxu0 %v480
    %518 = vmatpush.msra.mxu0 %v478
    %519 = vmatpush.msra.mxu0 %v476
    %520 = vmatpush.msra.mxu0 %v474
    %521 = vmatpush.msra.mxu0 %v472
    %522 = vmatpush.msra.mxu0 %v470
    %523 = vmatpush.msra.mxu0 %v468
    %524 = vmatpush.msra.mxu0 %v466
    %525 = vmatpush.msra.mxu0 %v464
    %526 = vmatpush.msra.mxu0 %v462
    %527 = vmatpush.msra.mxu0 %v460
    %528 = vmatpush.msra.mxu0 %v458
    %529 = vmatpush.msra.mxu0 %v456
    %530 = vmatmul.f32.gmra.mxu0 %v453
    %v531 = vpop.f32.mrf.mxu0
    %v532 = vadd.f32 %v491, %v531
    %533 = vdwg.mxu0
    %v534 = vtanh.pop %v512
    %v535 = vtanh.pop %v532
    %s536 = scalar_lea.vmem [#allocation2], 512
    %v537 = vld [vmem:[%s536] sm:$0xff]
    %v538 = vld [vmem:[%s536 + $0x8] sm:$0xff]
    %v539 = vld [vmem:[%s536 + $0x10] sm:$0xff]
    %v540 = vld [vmem:[%s536 + $0x18] sm:$0xff]
    %v541 = vld [vmem:[%s536 + $0x20] sm:$0xff]
    %v542 = vld [vmem:[%s536 + $0x28] sm:$0xff]
    %v543 = vld [vmem:[%s536 + $0x30] sm:$0xff]
    %v544 = vld [vmem:[%s536 + $0x38] sm:$0xff]
    %v545 = vld [vmem:[%s536 + $0x40] sm:$0xff]
    %v546 = vld [vmem:[%s536 + $0x48] sm:$0xff]
    %v547 = vld [vmem:[%s536 + $0x50] sm:$0xff]
    %v548 = vld [vmem:[%s536 + $0x58] sm:$0xff]
    %v549 = vld [vmem:[%s536 + $0x60] sm:$0xff]
    %v550 = vld [vmem:[%s536 + $0x68] sm:$0xff]
    %v551 = vld [vmem:[%s536 + $0x70] sm:$0xff]
    %v552 = vld [vmem:[%s536 + $0x78] sm:$0xff]
    %v553 = vld [vmem:[%s536 + $0x80] sm:$0xff]
    %v554 = vld [vmem:[%s536 + $0x88] sm:$0xff]
    %v555 = vld [vmem:[%s536 + $0x90] sm:$0xff]
    %v556 = vld [vmem:[%s536 + $0x98] sm:$0xff]
    %v557 = vld [vmem:[%s536 + $0xa0] sm:$0xff]
    %v558 = vld [vmem:[%s536 + $0xa8] sm:$0xff]
    %v559 = vld [vmem:[%s536 + $0xb0] sm:$0xff]
    %v560 = vld [vmem:[%s536 + $0xb8] sm:$0xff]
    %v561 = vld [vmem:[%s536 + $0xc0] sm:$0xff]
    %v562 = vld [vmem:[%s536 + $0xc8] sm:$0xff]
    %v563 = vld [vmem:[%s536 + $0xd0] sm:$0xff]
    %v564 = vld [vmem:[%s536 + $0xd8] sm:$0xff]
    %v565 = vld [vmem:[%s536 + $0xe0] sm:$0xff]
    %v566 = vld [vmem:[%s536 + $0xe8] sm:$0xff]
    %v567 = vld [vmem:[%s536 + $0xf0] sm:$0xff]
    %v568 = vld [vmem:[%s536 + $0xf8] sm:$0xff]
    %v569 = vld [vmem:[%s536 + $0x100] sm:$0xff]
    %v570 = vld [vmem:[%s536 + $0x108] sm:$0xff]
    %v571 = vld [vmem:[%s536 + $0x110] sm:$0xff]
    %v572 = vld [vmem:[%s536 + $0x118] sm:$0xff]
    %v573 = vld [vmem:[%s536 + $0x120] sm:$0xff]
    %v574 = vld [vmem:[%s536 + $0x128] sm:$0xff]
    %v575 = vld [vmem:[%s536 + $0x130] sm:$0xff]
    %v576 = vld [vmem:[%s536 + $0x138] sm:$0xff]
    %v577 = vld [vmem:[%s536 + $0x140] sm:$0xff]
    %v578 = vld [vmem:[%s536 + $0x148] sm:$0xff]
    %v579 = vld [vmem:[%s536 + $0x150] sm:$0xff]
    %v580 = vld [vmem:[%s536 + $0x158] sm:$0xff]
    %v581 = vld [vmem:[%s536 + $0x160] sm:$0xff]
    %v582 = vld [vmem:[%s536 + $0x168] sm:$0xff]
    %v583 = vld [vmem:[%s536 + $0x170] sm:$0xff]
    %v584 = vld [vmem:[%s536 + $0x178] sm:$0xff]
    %v585 = vld [vmem:[%s536 + $0x180] sm:$0xff]
    %v586 = vld [vmem:[%s536 + $0x188] sm:$0xff]
    %v587 = vld [vmem:[%s536 + $0x190] sm:$0xff]
    %v588 = vld [vmem:[%s536 + $0x198] sm:$0xff]
    %v589 = vld [vmem:[%s536 + $0x1a0] sm:$0xff]
    %v590 = vld [vmem:[%s536 + $0x1a8] sm:$0xff]
    %v591 = vld [vmem:[%s536 + $0x1b0] sm:$0xff]
    %v592 = vld [vmem:[%s536 + $0x1b8] sm:$0xff]
    %v593 = vld [vmem:[%s536 + $0x1c0] sm:$0xff]
    %v594 = vld [vmem:[%s536 + $0x1c8] sm:$0xff]
    %v595 = vld [vmem:[%s536 + $0x1d0] sm:$0xff]
    %v596 = vld [vmem:[%s536 + $0x1d8] sm:$0xff]
    %v597 = vld [vmem:[%s536 + $0x1e0] sm:$0xff]
    %v598 = vld [vmem:[%s536 + $0x1e8] sm:$0xff]
    %v599 = vld [vmem:[%s536 + $0x1f0] sm:$0xff]
    %v600 = vld [vmem:[%s536 + $0x1f8] sm:$0xff]
    %601 = vmatpush.msra.mxu0 %v567
    %602 = vmatpush.msra.mxu0 %v565
    %603 = vmatpush.msra.mxu0 %v563
    %604 = vmatpush.msra.mxu0 %v561
    %605 = vmatpush.msra.mxu0 %v559
    %606 = vmatpush.msra.mxu0 %v557
    %607 = vmatpush.msra.mxu0 %v555
    %608 = vmatpush.msra.mxu0 %v553
    %609 = vmatpush.msra.mxu0 %v551
    %610 = vmatpush.msra.mxu0 %v549
    %611 = vmatpush.msra.mxu0 %v547
    %612 = vmatpush.msra.mxu0 %v545
    %613 = vmatpush.msra.mxu0 %v543
    %614 = vmatpush.msra.mxu0 %v541
    %615 = vmatpush.msra.mxu0 %v539
    %616 = vmatpush.msra.mxu0 %v537
    %617 = vmatmul.f32.gmra.mxu0 %v534
    %v618 = vpop.f32.mrf.mxu0
    %v619 = vadd.f32 0.0, %v618
    %620 = vdwg.mxu0
    %621 = vmatpush.msra.mxu0 %v599
    %622 = vmatpush.msra.mxu0 %v597
    %623 = vmatpush.msra.mxu0 %v595
    %624 = vmatpush.msra.mxu0 %v593
    %625 = vmatpush.msra.mxu0 %v591
    %626 = vmatpush.msra.mxu0 %v589
    %627 = vmatpush.msra.mxu0 %v587
    %628 = vmatpush.msra.mxu0 %v585
    %629 = vmatpush.msra.mxu0 %v583
    %630 = vmatpush.msra.mxu0 %v581
    %631 = vmatpush.msra.mxu0 %v579
    %632 = vmatpush.msra.mxu0 %v577
    %633 = vmatpush.msra.mxu0 %v575
    %634 = vmatpush.msra.mxu0 %v573
    %635 = vmatpush.msra.mxu0 %v571
    %636 = vmatpush.msra.mxu0 %v569
    %637 = vmatmul.f32.gmra.mxu0 %v535
    %v638 = vpop.f32.mrf.mxu0
    %v639 = vadd.f32 %v619, %v638
    %640 = vdwg.mxu0
    %641 = vmatpush.msra.mxu0 %v568
    %642 = vmatpush.msra.mxu0 %v566
    %643 = vmatpush.msra.mxu0 %v564
    %644 = vmatpush.msra.mxu0 %v562
    %645 = vmatpush.msra.mxu0 %v560
    %646 = vmatpush.msra.mxu0 %v558
    %647 = vmatpush.msra.mxu0 %v556
    %648 = vmatpush.msra.mxu0 %v554
    %649 = vmatpush.msra.mxu0 %v552
    %650 = vmatpush.msra.mxu0 %v550
    %651 = vmatpush.msra.mxu0 %v548
    %652 = vmatpush.msra.mxu0 %v546
    %653 = vmatpush.msra.mxu0 %v544
    %654 = vmatpush.msra.mxu0 %v542
    %655 = vmatpush.msra.mxu0 %v540
    %656 = vmatpush.msra.mxu0 %v538
    %657 = vmatmul.f32.gmra.mxu0 %v534
    %v658 = vpop.f32.mrf.mxu0
    %v659 = vadd.f32 0.0, %v658
    %660 = vdwg.mxu0
    %661 = vmatpush.msra.mxu0 %v600
    %662 = vmatpush.msra.mxu0 %v598
    %663 = vmatpush.msra.mxu0 %v596
    %664 = vmatpush.msra.mxu0 %v594
    %665 = vmatpush.msra.mxu0 %v592
    %666 = vmatpush.msra.mxu0 %v590
    %667 = vmatpush.msra.mxu0 %v588
    %668 = vmatpush.msra.mxu0 %v586
    %669 = vmatpush.msra.mxu0 %v584
    %670 = vmatpush.msra.mxu0 %v582
    %671 = vmatpush.msra.mxu0 %v580
    %672 = vmatpush.msra.mxu0 %v578
    %673 = vmatpush.msra.mxu0 %v576
    %674 = vmatpush.msra.mxu0 %v574
    %675 = vmatpush.msra.mxu0 %v572
    %676 = vmatpush.msra.mxu0 %v570
    %677 = vmatmul.f32.gmra.mxu0 %v535
    %v678 = vpop.f32.mrf.mxu0
    %v679 = vadd.f32 %v659, %v678
    %680 = vdwg.mxu0
    %v681 = vmul.f32 %v639, 1.442695
    %v682 = vpow.pop %v681
    %v683 = vmul.f32 %v679, 1.442695
    %v684 = vpow.pop %v683
    %s685 = scalar_lea.vmem %s6, 256
    %v686 = vld [vmem:[%s685] sm:$0xff]
    %v687 = vld [vmem:[%s685 + $0x8] sm:$0xff]
    %v688 = vld [vmem:[%s685 + $0x10] sm:$0xff]
    %v689 = vld [vmem:[%s685 + $0x18] sm:$0xff]
    %v690 = vld [vmem:[%s685 + $0x20] sm:$0xff]
    %v691 = vld [vmem:[%s685 + $0x28] sm:$0xff]
    %v692 = vld [vmem:[%s685 + $0x30] sm:$0xff]
    %v693 = vld [vmem:[%s685 + $0x38] sm:$0xff]
    %v694 = vld [vmem:[%s685 + $0x40] sm:$0xff]
    %v695 = vld [vmem:[%s685 + $0x48] sm:$0xff]
    %v696 = vld [vmem:[%s685 + $0x50] sm:$0xff]
    %v697 = vld [vmem:[%s685 + $0x58] sm:$0xff]
    %v698 = vld [vmem:[%s685 + $0x60] sm:$0xff]
    %v699 = vld [vmem:[%s685 + $0x68] sm:$0xff]
    %v700 = vld [vmem:[%s685 + $0x70] sm:$0xff]
    %v701 = vld [vmem:[%s685 + $0x78] sm:$0xff]
    %v702 = vld [vmem:[%s685 + $0x80] sm:$0xff]
    %v703 = vld [vmem:[%s685 + $0x88] sm:$0xff]
    %v704 = vld [vmem:[%s685 + $0x90] sm:$0xff]
    %v705 = vld [vmem:[%s685 + $0x98] sm:$0xff]
    %v706 = vld [vmem:[%s685 + $0xa0] sm:$0xff]
    %v707 = vld [vmem:[%s685 + $0xa8] sm:$0xff]
    %v708 = vld [vmem:[%s685 + $0xb0] sm:$0xff]
    %v709 = vld [vmem:[%s685 + $0xb8] sm:$0xff]
    %v710 = vld [vmem:[%s685 + $0xc0] sm:$0xff]
    %v711 = vld [vmem:[%s685 + $0xc8] sm:$0xff]
    %v712 = vld [vmem:[%s685 + $0xd0] sm:$0xff]
    %v713 = vld [vmem:[%s685 + $0xd8] sm:$0xff]
    %v714 = vld [vmem:[%s685 + $0xe0] sm:$0xff]
    %v715 = vld [vmem:[%s685 + $0xe8] sm:$0xff]
    %v716 = vld [vmem:[%s685 + $0xf0] sm:$0xff]
    %v717 = vld [vmem:[%s685 + $0xf8] sm:$0xff]
    %s718 = scalar_lea.vmem %s7, 1
    %v719 = vld [vmem:[%s718] sm:$0x1]
    %v721 = vperm.slane %v719, 0
    %723 = vmatpush.msra.mxu0 %v701
    %724 = vmatpush.msra.mxu0 %v700
    %725 = vmatpush.msra.mxu0 %v699
    %726 = vmatpush.msra.mxu0 %v698
    %727 = vmatpush.msra.mxu0 %v697
    %728 = vmatpush.msra.mxu0 %v696
    %729 = vmatpush.msra.mxu0 %v695
    %730 = vmatpush.msra.mxu0 %v694
    %731 = vmatpush.msra.mxu0 %v693
    %732 = vmatpush.msra.mxu0 %v692
    %733 = vmatpush.msra.mxu0 %v691
    %734 = vmatpush.msra.mxu0 %v690
    %735 = vmatpush.msra.mxu0 %v689
    %736 = vmatpush.msra.mxu0 %v688
    %737 = vmatpush.msra.mxu0 %v687
    %738 = vmatpush.msra.mxu0 %v686
    %739 = vmatmul.f32.gmra.mxu0 %v682
    %v740 = vpop.f32.mrf.mxu0
    %v741 = vadd.f32 %v721, %v740
    %742 = vdwg.mxu0
    %743 = vmatpush.msra.mxu0 %v717
    %744 = vmatpush.msra.mxu0 %v716
    %745 = vmatpush.msra.mxu0 %v715
    %746 = vmatpush.msra.mxu0 %v714
    %747 = vmatpush.msra.mxu0 %v713
    %748 = vmatpush.msra.mxu0 %v712
    %749 = vmatpush.msra.mxu0 %v711
    %750 = vmatpush.msra.mxu0 %v710
    %751 = vmatpush.msra.mxu0 %v709
    %752 = vmatpush.msra.mxu0 %v708
    %753 = vmatpush.msra.mxu0 %v707
    %754 = vmatpush.msra.mxu0 %v706
    %755 = vmatpush.msra.mxu0 %v705
    %756 = vmatpush.msra.mxu0 %v704
    %757 = vmatpush.msra.mxu0 %v703
    %758 = vmatpush.msra.mxu0 %v702
    %759 = vmatmul.f32.gmra.mxu0 %v684
    %v760 = vpop.f32.mrf.mxu0
    %v761 = vadd.f32 %v741, %v760
    %762 = vdwg.mxu0
    %s763 = sld [smem:[#allocation6 + $0x1]]
    %v764 = vstv %s763
    %v765 = vmul.f32 %v420, %v764
    %v766 = vadd.f32 %v761, %v765
    %s767 = sld [smem:[#allocation7 + $0x1]]
    %v768 = vstv %s767
    %v769 = vadd.f32 %v766, %v768
    %v770 = vmul.f32 %v769, %v769
    %s771 = scalar_lea.vmem %s1, 32
    %v772 = vld [vmem:[%s771] sm:$0xff]
    %v773 = vld [vmem:[%s771 + $0x8] sm:$0xff]
    %s774 = scalar_lea.vmem %s2, 2
    %v775 = vld [vmem:[%s774] sm:$0x1]
    %v777 = vperm.slane %v775, 0
    %v780 = vsel %vm85, %v770, 0
    %782 = vmatpush.msra.mxu0 0.0
    %783 = vmatpush.msra.mxu0 0.0
    %784 = vmatpush.msra.mxu0 0.0
    %785 = vmatpush.msra.mxu0 0.0
    %786 = vmatpush.msra.mxu0 0.0
    %787 = vmatpush.msra.mxu0 0.0
    %788 = vmatpush.msra.mxu0 0.0
    %789 = vmatpush.msra.mxu0 0.0
    %790 = vmatpush.msra.mxu0 0.0
    %791 = vmatpush.msra.mxu0 0.0
    %792 = vmatpush.msra.mxu0 0.0
    %793 = vmatpush.msra.mxu0 0.0
    %794 = vmatpush.msra.mxu0 0.0
    %795 = vmatpush.msra.mxu0 0.0
    %796 = vmatpush.msra.mxu0 %v773
    %797 = vmatpush.msra.mxu0 %v772
    %798 = vmatmul.f32.gmra.mxu0 %v780
    %v799 = vpop.f32.mrf.mxu0
    %v800 = vadd.f32 %v777, %v799
    %801 = vdwg.mxu0
    %v802 = vtanh.pop %v800
    %s803 = scalar_lea.vmem %s3, 512
    %v804 = vld [vmem:[%s803] sm:$0xff]
    %v805 = vld [vmem:[%s803 + $0x8] sm:$0xff]
    %v806 = vld [vmem:[%s803 + $0x10] sm:$0xff]
    %v807 = vld [vmem:[%s803 + $0x18] sm:$0xff]
    %v808 = vld [vmem:[%s803 + $0x20] sm:$0xff]
    %v809 = vld [vmem:[%s803 + $0x28] sm:$0xff]
    %v810 = vld [vmem:[%s803 + $0x30] sm:$0xff]
    %v811 = vld [vmem:[%s803 + $0x38] sm:$0xff]
    %v812 = vld [vmem:[%s803 + $0x40] sm:$0xff]
    %v813 = vld [vmem:[%s803 + $0x48] sm:$0xff]
    %v814 = vld [vmem:[%s803 + $0x50] sm:$0xff]
    %v815 = vld [vmem:[%s803 + $0x58] sm:$0xff]
    %v816 = vld [vmem:[%s803 + $0x60] sm:$0xff]
    %v817 = vld [vmem:[%s803 + $0x68] sm:$0xff]
    %v818 = vld [vmem:[%s803 + $0x70] sm:$0xff]
    %v819 = vld [vmem:[%s803 + $0x78] sm:$0xff]
    %v820 = vld [vmem:[%s803 + $0x80] sm:$0xff]
    %v821 = vld [vmem:[%s803 + $0x88] sm:$0xff]
    %v822 = vld [vmem:[%s803 + $0x90] sm:$0xff]
    %v823 = vld [vmem:[%s803 + $0x98] sm:$0xff]
    %v824 = vld [vmem:[%s803 + $0xa0] sm:$0xff]
    %v825 = vld [vmem:[%s803 + $0xa8] sm:$0xff]
    %v826 = vld [vmem:[%s803 + $0xb0] sm:$0xff]
    %v827 = vld [vmem:[%s803 + $0xb8] sm:$0xff]
    %v828 = vld [vmem:[%s803 + $0xc0] sm:$0xff]
    %v829 = vld [vmem:[%s803 + $0xc8] sm:$0xff]
    %v830 = vld [vmem:[%s803 + $0xd0] sm:$0xff]
    %v831 = vld [vmem:[%s803 + $0xd8] sm:$0xff]
    %v832 = vld [vmem:[%s803 + $0xe0] sm:$0xff]
    %v833 = vld [vmem:[%s803 + $0xe8] sm:$0xff]
    %v834 = vld [vmem:[%s803 + $0xf0] sm:$0xff]
    %v835 = vld [vmem:[%s803 + $0xf8] sm:$0xff]
    %s836 = scalar_lea.vmem %s4, 4
    %v837 = vld [vmem:[%s836] sm:$0x3]
    %v839 = vperm.slane %v837, 0
    %v840 = vperm.slane %v837, 1
    %843 = vmatpush.msra.mxu0 %v834
    %844 = vmatpush.msra.mxu0 %v832
    %845 = vmatpush.msra.mxu0 %v830
    %846 = vmatpush.msra.mxu0 %v828
    %847 = vmatpush.msra.mxu0 %v826
    %848 = vmatpush.msra.mxu0 %v824
    %849 = vmatpush.msra.mxu0 %v822
    %850 = vmatpush.msra.mxu0 %v820
    %851 = vmatpush.msra.mxu0 %v818
    %852 = vmatpush.msra.mxu0 %v816
    %853 = vmatpush.msra.mxu0 %v814
    %854 = vmatpush.msra.mxu0 %v812
    %855 = vmatpush.msra.mxu0 %v810
    %856 = vmatpush.msra.mxu0 %v808
    %857 = vmatpush.msra.mxu0 %v806
    %858 = vmatpush.msra.mxu0 %v804
    %859 = vmatmul.f32.gmra.mxu0 %v802
    %v860 = vpop.f32.mrf.mxu0
    %v861 = vadd.f32 %v839, %v860
    %862 = vdwg.mxu0
    %863 = vmatpush.msra.mxu0 %v835
    %864 = vmatpush.msra.mxu0 %v833
    %865 = vmatpush.msra.mxu0 %v831
    %866 = vmatpush.msra.mxu0 %v829
    %867 = vmatpush.msra.mxu0 %v827
    %868 = vmatpush.msra.mxu0 %v825
    %869 = vmatpush.msra.mxu0 %v823
    %870 = vmatpush.msra.mxu0 %v821
    %871 = vmatpush.msra.mxu0 %v819
    %872 = vmatpush.msra.mxu0 %v817
    %873 = vmatpush.msra.mxu0 %v815
    %874 = vmatpush.msra.mxu0 %v813
    %875 = vmatpush.msra.mxu0 %v811
    %876 = vmatpush.msra.mxu0 %v809
    %877 = vmatpush.msra.mxu0 %v807
    %878 = vmatpush.msra.mxu0 %v805
    %879 = vmatmul.f32.gmra.mxu0 %v802
    %v880 = vpop.f32.mrf.mxu0
    %v881 = vadd.f32 %v840, %v880
    %882 = vdwg.mxu0
    %v883 = vtanh.pop %v861
    %v884 = vtanh.pop %v881
    %s885 = scalar_lea.vmem [#allocation2], 1024
    %v886 = vld [vmem:[%s885] sm:$0xff]
    %v887 = vld [vmem:[%s885 + $0x8] sm:$0xff]
    %v888 = vld [vmem:[%s885 + $0x10] sm:$0xff]
    %v889 = vld [vmem:[%s885 + $0x18] sm:$0xff]
    %v890 = vld [vmem:[%s885 + $0x20] sm:$0xff]
    %v891 = vld [vmem:[%s885 + $0x28] sm:$0xff]
    %v892 = vld [vmem:[%s885 + $0x30] sm:$0xff]
    %v893 = vld [vmem:[%s885 + $0x38] sm:$0xff]
    %v894 = vld [vmem:[%s885 + $0x40] sm:$0xff]
    %v895 = vld [vmem:[%s885 + $0x48] sm:$0xff]
    %v896 = vld [vmem:[%s885 + $0x50] sm:$0xff]
    %v897 = vld [vmem:[%s885 + $0x58] sm:$0xff]
    %v898 = vld [vmem:[%s885 + $0x60] sm:$0xff]
    %v899 = vld [vmem:[%s885 + $0x68] sm:$0xff]
    %v900 = vld [vmem:[%s885 + $0x70] sm:$0xff]
    %v901 = vld [vmem:[%s885 + $0x78] sm:$0xff]
    %v902 = vld [vmem:[%s885 + $0x80] sm:$0xff]
    %v903 = vld [vmem:[%s885 + $0x88] sm:$0xff]
    %v904 = vld [vmem:[%s885 + $0x90] sm:$0xff]
    %v905 = vld [vmem:[%s885 + $0x98] sm:$0xff]
    %v906 = vld [vmem:[%s885 + $0xa0] sm:$0xff]
    %v907 = vld [vmem:[%s885 + $0xa8] sm:$0xff]
    %v908 = vld [vmem:[%s885 + $0xb0] sm:$0xff]
    %v909 = vld [vmem:[%s885 + $0xb8] sm:$0xff]
    %v910 = vld [vmem:[%s885 + $0xc0] sm:$0xff]
    %v911 = vld [vmem:[%s885 + $0xc8] sm:$0xff]
    %v912 = vld [vmem:[%s885 + $0xd0] sm:$0xff]
    %v913 = vld [vmem:[%s885 + $0xd8] sm:$0xff]
    %v914 = vld [vmem:[%s885 + $0xe0] sm:$0xff]
    %v915 = vld [vmem:[%s885 + $0xe8] sm:$0xff]
    %v916 = vld [vmem:[%s885 + $0xf0] sm:$0xff]
    %v917 = vld [vmem:[%s885 + $0xf8] sm:$0xff]
    %v918 = vld [vmem:[%s885 + $0x100] sm:$0xff]
    %v919 = vld [vmem:[%s885 + $0x108] sm:$0xff]
    %v920 = vld [vmem:[%s885 + $0x110] sm:$0xff]
    %v921 = vld [vmem:[%s885 + $0x118] sm:$0xff]
    %v922 = vld [vmem:[%s885 + $0x120] sm:$0xff]
    %v923 = vld [vmem:[%s885 + $0x128] sm:$0xff]
    %v924 = vld [vmem:[%s885 + $0x130] sm:$0xff]
    %v925 = vld [vmem:[%s885 + $0x138] sm:$0xff]
    %v926 = vld [vmem:[%s885 + $0x140] sm:$0xff]
    %v927 = vld [vmem:[%s885 + $0x148] sm:$0xff]
    %v928 = vld [vmem:[%s885 + $0x150] sm:$0xff]
    %v929 = vld [vmem:[%s885 + $0x158] sm:$0xff]
    %v930 = vld [vmem:[%s885 + $0x160] sm:$0xff]
    %v931 = vld [vmem:[%s885 + $0x168] sm:$0xff]
    %v932 = vld [vmem:[%s885 + $0x170] sm:$0xff]
    %v933 = vld [vmem:[%s885 + $0x178] sm:$0xff]
    %v934 = vld [vmem:[%s885 + $0x180] sm:$0xff]
    %v935 = vld [vmem:[%s885 + $0x188] sm:$0xff]
    %v936 = vld [vmem:[%s885 + $0x190] sm:$0xff]
    %v937 = vld [vmem:[%s885 + $0x198] sm:$0xff]
    %v938 = vld [vmem:[%s885 + $0x1a0] sm:$0xff]
    %v939 = vld [vmem:[%s885 + $0x1a8] sm:$0xff]
    %v940 = vld [vmem:[%s885 + $0x1b0] sm:$0xff]
    %v941 = vld [vmem:[%s885 + $0x1b8] sm:$0xff]
    %v942 = vld [vmem:[%s885 + $0x1c0] sm:$0xff]
    %v943 = vld [vmem:[%s885 + $0x1c8] sm:$0xff]
    %v944 = vld [vmem:[%s885 + $0x1d0] sm:$0xff]
    %v945 = vld [vmem:[%s885 + $0x1d8] sm:$0xff]
    %v946 = vld [vmem:[%s885 + $0x1e0] sm:$0xff]
    %v947 = vld [vmem:[%s885 + $0x1e8] sm:$0xff]
    %v948 = vld [vmem:[%s885 + $0x1f0] sm:$0xff]
    %v949 = vld [vmem:[%s885 + $0x1f8] sm:$0xff]
    %950 = vmatpush.msra.mxu0 %v916
    %951 = vmatpush.msra.mxu0 %v914
    %952 = vmatpush.msra.mxu0 %v912
    %953 = vmatpush.msra.mxu0 %v910
    %954 = vmatpush.msra.mxu0 %v908
    %955 = vmatpush.msra.mxu0 %v906
    %956 = vmatpush.msra.mxu0 %v904
    %957 = vmatpush.msra.mxu0 %v902
    %958 = vmatpush.msra.mxu0 %v900
    %959 = vmatpush.msra.mxu0 %v898
    %960 = vmatpush.msra.mxu0 %v896
    %961 = vmatpush.msra.mxu0 %v894
    %962 = vmatpush.msra.mxu0 %v892
    %963 = vmatpush.msra.mxu0 %v890
    %964 = vmatpush.msra.mxu0 %v888
    %965 = vmatpush.msra.mxu0 %v886
    %966 = vmatmul.f32.gmra.mxu0 %v883
    %v967 = vpop.f32.mrf.mxu0
    %v968 = vadd.f32 0.0, %v967
    %969 = vdwg.mxu0
    %970 = vmatpush.msra.mxu0 %v948
    %971 = vmatpush.msra.mxu0 %v946
    %972 = vmatpush.msra.mxu0 %v944
    %973 = vmatpush.msra.mxu0 %v942
    %974 = vmatpush.msra.mxu0 %v940
    %975 = vmatpush.msra.mxu0 %v938
    %976 = vmatpush.msra.mxu0 %v936
    %977 = vmatpush.msra.mxu0 %v934
    %978 = vmatpush.msra.mxu0 %v932
    %979 = vmatpush.msra.mxu0 %v930
    %980 = vmatpush.msra.mxu0 %v928
    %981 = vmatpush.msra.mxu0 %v926
    %982 = vmatpush.msra.mxu0 %v924
    %983 = vmatpush.msra.mxu0 %v922
    %984 = vmatpush.msra.mxu0 %v920
    %985 = vmatpush.msra.mxu0 %v918
    %986 = vmatmul.f32.gmra.mxu0 %v884
    %v987 = vpop.f32.mrf.mxu0
    %v988 = vadd.f32 %v968, %v987
    %989 = vdwg.mxu0
    %990 = vmatpush.msra.mxu0 %v917
    %991 = vmatpush.msra.mxu0 %v915
    %992 = vmatpush.msra.mxu0 %v913
    %993 = vmatpush.msra.mxu0 %v911
    %994 = vmatpush.msra.mxu0 %v909
    %995 = vmatpush.msra.mxu0 %v907
    %996 = vmatpush.msra.mxu0 %v905
    %997 = vmatpush.msra.mxu0 %v903
    %998 = vmatpush.msra.mxu0 %v901
    %999 = vmatpush.msra.mxu0 %v899
    %1000 = vmatpush.msra.mxu0 %v897
    %1001 = vmatpush.msra.mxu0 %v895
    %1002 = vmatpush.msra.mxu0 %v893
    %1003 = vmatpush.msra.mxu0 %v891
    %1004 = vmatpush.msra.mxu0 %v889
    %1005 = vmatpush.msra.mxu0 %v887
    %1006 = vmatmul.f32.gmra.mxu0 %v883
    %v1007 = vpop.f32.mrf.mxu0
    %v1008 = vadd.f32 0.0, %v1007
    %1009 = vdwg.mxu0
    %1010 = vmatpush.msra.mxu0 %v949
    %1011 = vmatpush.msra.mxu0 %v947
    %1012 = vmatpush.msra.mxu0 %v945
    %1013 = vmatpush.msra.mxu0 %v943
    %1014 = vmatpush.msra.mxu0 %v941
    %1015 = vmatpush.msra.mxu0 %v939
    %1016 = vmatpush.msra.mxu0 %v937
    %1017 = vmatpush.msra.mxu0 %v935
    %1018 = vmatpush.msra.mxu0 %v933
    %1019 = vmatpush.msra.mxu0 %v931
    %1020 = vmatpush.msra.mxu0 %v929
    %1021 = vmatpush.msra.mxu0 %v927
    %1022 = vmatpush.msra.mxu0 %v925
    %1023 = vmatpush.msra.mxu0 %v923
    %1024 = vmatpush.msra.mxu0 %v921
    %1025 = vmatpush.msra.mxu0 %v919
    %1026 = vmatmul.f32.gmra.mxu0 %v884
    %v1027 = vpop.f32.mrf.mxu0
    %v1028 = vadd.f32 %v1008, %v1027
    %1029 = vdwg.mxu0
    %v1030 = vmul.f32 %v988, 1.442695
    %v1031 = vpow.pop %v1030
    %v1032 = vmul.f32 %v1028, 1.442695
    %v1033 = vpow.pop %v1032
    %s1034 = scalar_lea.vmem %s6, 512
    %v1035 = vld [vmem:[%s1034] sm:$0xff]
    %v1036 = vld [vmem:[%s1034 + $0x8] sm:$0xff]
    %v1037 = vld [vmem:[%s1034 + $0x10] sm:$0xff]
    %v1038 = vld [vmem:[%s1034 + $0x18] sm:$0xff]
    %v1039 = vld [vmem:[%s1034 + $0x20] sm:$0xff]
    %v1040 = vld [vmem:[%s1034 + $0x28] sm:$0xff]
    %v1041 = vld [vmem:[%s1034 + $0x30] sm:$0xff]
    %v1042 = vld [vmem:[%s1034 + $0x38] sm:$0xff]
    %v1043 = vld [vmem:[%s1034 + $0x40] sm:$0xff]
    %v1044 = vld [vmem:[%s1034 + $0x48] sm:$0xff]
    %v1045 = vld [vmem:[%s1034 + $0x50] sm:$0xff]
    %v1046 = vld [vmem:[%s1034 + $0x58] sm:$0xff]
    %v1047 = vld [vmem:[%s1034 + $0x60] sm:$0xff]
    %v1048 = vld [vmem:[%s1034 + $0x68] sm:$0xff]
    %v1049 = vld [vmem:[%s1034 + $0x70] sm:$0xff]
    %v1050 = vld [vmem:[%s1034 + $0x78] sm:$0xff]
    %v1051 = vld [vmem:[%s1034 + $0x80] sm:$0xff]
    %v1052 = vld [vmem:[%s1034 + $0x88] sm:$0xff]
    %v1053 = vld [vmem:[%s1034 + $0x90] sm:$0xff]
    %v1054 = vld [vmem:[%s1034 + $0x98] sm:$0xff]
    %v1055 = vld [vmem:[%s1034 + $0xa0] sm:$0xff]
    %v1056 = vld [vmem:[%s1034 + $0xa8] sm:$0xff]
    %v1057 = vld [vmem:[%s1034 + $0xb0] sm:$0xff]
    %v1058 = vld [vmem:[%s1034 + $0xb8] sm:$0xff]
    %v1059 = vld [vmem:[%s1034 + $0xc0] sm:$0xff]
    %v1060 = vld [vmem:[%s1034 + $0xc8] sm:$0xff]
    %v1061 = vld [vmem:[%s1034 + $0xd0] sm:$0xff]
    %v1062 = vld [vmem:[%s1034 + $0xd8] sm:$0xff]
    %v1063 = vld [vmem:[%s1034 + $0xe0] sm:$0xff]
    %v1064 = vld [vmem:[%s1034 + $0xe8] sm:$0xff]
    %v1065 = vld [vmem:[%s1034 + $0xf0] sm:$0xff]
    %v1066 = vld [vmem:[%s1034 + $0xf8] sm:$0xff]
    %s1067 = scalar_lea.vmem %s7, 2
    %v1068 = vld [vmem:[%s1067] sm:$0x1]
    %v1070 = vperm.slane %v1068, 0
    %1072 = vmatpush.msra.mxu0 %v1050
    %1073 = vmatpush.msra.mxu0 %v1049
    %1074 = vmatpush.msra.mxu0 %v1048
    %1075 = vmatpush.msra.mxu0 %v1047
    %1076 = vmatpush.msra.mxu0 %v1046
    %1077 = vmatpush.msra.mxu0 %v1045
    %1078 = vmatpush.msra.mxu0 %v1044
    %1079 = vmatpush.msra.mxu0 %v1043
    %1080 = vmatpush.msra.mxu0 %v1042
    %1081 = vmatpush.msra.mxu0 %v1041
    %1082 = vmatpush.msra.mxu0 %v1040
    %1083 = vmatpush.msra.mxu0 %v1039
    %1084 = vmatpush.msra.mxu0 %v1038
    %1085 = vmatpush.msra.mxu0 %v1037
    %1086 = vmatpush.msra.mxu0 %v1036
    %1087 = vmatpush.msra.mxu0 %v1035
    %1088 = vmatmul.f32.gmra.mxu0 %v1031
    %v1089 = vpop.f32.mrf.mxu0
    %v1090 = vadd.f32 %v1070, %v1089
    %1091 = vdwg.mxu0
    %1092 = vmatpush.msra.mxu0 %v1066
    %1093 = vmatpush.msra.mxu0 %v1065
    %1094 = vmatpush.msra.mxu0 %v1064
    %1095 = vmatpush.msra.mxu0 %v1063
    %1096 = vmatpush.msra.mxu0 %v1062
    %1097 = vmatpush.msra.mxu0 %v1061
    %1098 = vmatpush.msra.mxu0 %v1060
    %1099 = vmatpush.msra.mxu0 %v1059
    %1100 = vmatpush.msra.mxu0 %v1058
    %1101 = vmatpush.msra.mxu0 %v1057
    %1102 = vmatpush.msra.mxu0 %v1056
    %1103 = vmatpush.msra.mxu0 %v1055
    %1104 = vmatpush.msra.mxu0 %v1054
    %1105 = vmatpush.msra.mxu0 %v1053
    %1106 = vmatpush.msra.mxu0 %v1052
    %1107 = vmatpush.msra.mxu0 %v1051
    %1108 = vmatmul.f32.gmra.mxu0 %v1033
    %v1109 = vpop.f32.mrf.mxu0
    %v1110 = vadd.f32 %v1090, %v1109
    %1111 = vdwg.mxu0
    %s1112 = sld [smem:[#allocation6 + $0x2]]
    %v1113 = vstv %s1112
    %v1114 = vmul.f32 %v769, %v1113
    %v1115 = vadd.f32 %v1110, %v1114
    %s1116 = sld [smem:[#allocation7 + $0x2]]
    %v1117 = vstv %s1116
    %v1118 = vadd.f32 %v1115, %v1117
    %v1119 = vmul.f32 %v1118, %v1118
    %s1120 = scalar_lea.vmem %s1, 48
    %v1121 = vld [vmem:[%s1120] sm:$0xff]
    %v1122 = vld [vmem:[%s1120 + $0x8] sm:$0xff]
    %s1123 = scalar_lea.vmem %s2, 3
    %v1124 = vld [vmem:[%s1123] sm:$0x1]
    %v1126 = vperm.slane %v1124, 0
    %v1129 = vsel %vm85, %v1119, 0
    %1131 = vmatpush.msra.mxu0 0.0
    %1132 = vmatpush.msra.mxu0 0.0
    %1133 = vmatpush.msra.mxu0 0.0
    %1134 = vmatpush.msra.mxu0 0.0
    %1135 = vmatpush.msra.mxu0 0.0
    %1136 = vmatpush.msra.mxu0 0.0
    %1137 = vmatpush.msra.mxu0 0.0
    %1138 = vmatpush.msra.mxu0 0.0
    %1139 = vmatpush.msra.mxu0 0.0
    %1140 = vmatpush.msra.mxu0 0.0
    %1141 = vmatpush.msra.mxu0 0.0
    %1142 = vmatpush.msra.mxu0 0.0
    %1143 = vmatpush.msra.mxu0 0.0
    %1144 = vmatpush.msra.mxu0 0.0
    %1145 = vmatpush.msra.mxu0 %v1122
    %1146 = vmatpush.msra.mxu0 %v1121
    %1147 = vmatmul.f32.gmra.mxu0 %v1129
    %v1148 = vpop.f32.mrf.mxu0
    %v1149 = vadd.f32 %v1126, %v1148
    %1150 = vdwg.mxu0
    %v1151 = vtanh.pop %v1149
    %s1152 = scalar_lea.vmem %s3, 768
    %v1153 = vld [vmem:[%s1152] sm:$0xff]
    %v1154 = vld [vmem:[%s1152 + $0x8] sm:$0xff]
    %v1155 = vld [vmem:[%s1152 + $0x10] sm:$0xff]
    %v1156 = vld [vmem:[%s1152 + $0x18] sm:$0xff]
    %v1157 = vld [vmem:[%s1152 + $0x20] sm:$0xff]
    %v1158 = vld [vmem:[%s1152 + $0x28] sm:$0xff]
    %v1159 = vld [vmem:[%s1152 + $0x30] sm:$0xff]
    %v1160 = vld [vmem:[%s1152 + $0x38] sm:$0xff]
    %v1161 = vld [vmem:[%s1152 + $0x40] sm:$0xff]
    %v1162 = vld [vmem:[%s1152 + $0x48] sm:$0xff]
    %v1163 = vld [vmem:[%s1152 + $0x50] sm:$0xff]
    %v1164 = vld [vmem:[%s1152 + $0x58] sm:$0xff]
    %v1165 = vld [vmem:[%s1152 + $0x60] sm:$0xff]
    %v1166 = vld [vmem:[%s1152 + $0x68] sm:$0xff]
    %v1167 = vld [vmem:[%s1152 + $0x70] sm:$0xff]
    %v1168 = vld [vmem:[%s1152 + $0x78] sm:$0xff]
    %v1169 = vld [vmem:[%s1152 + $0x80] sm:$0xff]
    %v1170 = vld [vmem:[%s1152 + $0x88] sm:$0xff]
    %v1171 = vld [vmem:[%s1152 + $0x90] sm:$0xff]
    %v1172 = vld [vmem:[%s1152 + $0x98] sm:$0xff]
    %v1173 = vld [vmem:[%s1152 + $0xa0] sm:$0xff]
    %v1174 = vld [vmem:[%s1152 + $0xa8] sm:$0xff]
    %v1175 = vld [vmem:[%s1152 + $0xb0] sm:$0xff]
    %v1176 = vld [vmem:[%s1152 + $0xb8] sm:$0xff]
    %v1177 = vld [vmem:[%s1152 + $0xc0] sm:$0xff]
    %v1178 = vld [vmem:[%s1152 + $0xc8] sm:$0xff]
    %v1179 = vld [vmem:[%s1152 + $0xd0] sm:$0xff]
    %v1180 = vld [vmem:[%s1152 + $0xd8] sm:$0xff]
    %v1181 = vld [vmem:[%s1152 + $0xe0] sm:$0xff]
    %v1182 = vld [vmem:[%s1152 + $0xe8] sm:$0xff]
    %v1183 = vld [vmem:[%s1152 + $0xf0] sm:$0xff]
    %v1184 = vld [vmem:[%s1152 + $0xf8] sm:$0xff]
    %s1185 = scalar_lea.vmem %s4, 6
    %v1186 = vld [vmem:[%s1185] sm:$0x3]
    %v1188 = vperm.slane %v1186, 0
    %v1189 = vperm.slane %v1186, 1
    %1192 = vmatpush.msra.mxu0 %v1183
    %1193 = vmatpush.msra.mxu0 %v1181
    %1194 = vmatpush.msra.mxu0 %v1179
    %1195 = vmatpush.msra.mxu0 %v1177
    %1196 = vmatpush.msra.mxu0 %v1175
    %1197 = vmatpush.msra.mxu0 %v1173
    %1198 = vmatpush.msra.mxu0 %v1171
    %1199 = vmatpush.msra.mxu0 %v1169
    %1200 = vmatpush.msra.mxu0 %v1167
    %1201 = vmatpush.msra.mxu0 %v1165
    %1202 = vmatpush.msra.mxu0 %v1163
    %1203 = vmatpush.msra.mxu0 %v1161
    %1204 = vmatpush.msra.mxu0 %v1159
    %1205 = vmatpush.msra.mxu0 %v1157
    %1206 = vmatpush.msra.mxu0 %v1155
    %1207 = vmatpush.msra.mxu0 %v1153
    %1208 = vmatmul.f32.gmra.mxu0 %v1151
    %v1209 = vpop.f32.mrf.mxu0
    %v1210 = vadd.f32 %v1188, %v1209
    %1211 = vdwg.mxu0
    %1212 = vmatpush.msra.mxu0 %v1184
    %1213 = vmatpush.msra.mxu0 %v1182
    %1214 = vmatpush.msra.mxu0 %v1180
    %1215 = vmatpush.msra.mxu0 %v1178
    %1216 = vmatpush.msra.mxu0 %v1176
    %1217 = vmatpush.msra.mxu0 %v1174
    %1218 = vmatpush.msra.mxu0 %v1172
    %1219 = vmatpush.msra.mxu0 %v1170
    %1220 = vmatpush.msra.mxu0 %v1168
    %1221 = vmatpush.msra.mxu0 %v1166
    %1222 = vmatpush.msra.mxu0 %v1164
    %1223 = vmatpush.msra.mxu0 %v1162
    %1224 = vmatpush.msra.mxu0 %v1160
    %1225 = vmatpush.msra.mxu0 %v1158
    %1226 = vmatpush.msra.mxu0 %v1156
    %1227 = vmatpush.msra.mxu0 %v1154
    %1228 = vmatmul.f32.gmra.mxu0 %v1151
    %v1229 = vpop.f32.mrf.mxu0
    %v1230 = vadd.f32 %v1189, %v1229
    %1231 = vdwg.mxu0
    %v1232 = vtanh.pop %v1210
    %v1233 = vtanh.pop %v1230
    %s1234 = scalar_lea.vmem [#allocation2], 1536
    %v1235 = vld [vmem:[%s1234] sm:$0xff]
    %v1236 = vld [vmem:[%s1234 + $0x8] sm:$0xff]
    %v1237 = vld [vmem:[%s1234 + $0x10] sm:$0xff]
    %v1238 = vld [vmem:[%s1234 + $0x18] sm:$0xff]
    %v1239 = vld [vmem:[%s1234 + $0x20] sm:$0xff]
    %v1240 = vld [vmem:[%s1234 + $0x28] sm:$0xff]
    %v1241 = vld [vmem:[%s1234 + $0x30] sm:$0xff]
    %v1242 = vld [vmem:[%s1234 + $0x38] sm:$0xff]
    %v1243 = vld [vmem:[%s1234 + $0x40] sm:$0xff]
    %v1244 = vld [vmem:[%s1234 + $0x48] sm:$0xff]
    %v1245 = vld [vmem:[%s1234 + $0x50] sm:$0xff]
    %v1246 = vld [vmem:[%s1234 + $0x58] sm:$0xff]
    %v1247 = vld [vmem:[%s1234 + $0x60] sm:$0xff]
    %v1248 = vld [vmem:[%s1234 + $0x68] sm:$0xff]
    %v1249 = vld [vmem:[%s1234 + $0x70] sm:$0xff]
    %v1250 = vld [vmem:[%s1234 + $0x78] sm:$0xff]
    %v1251 = vld [vmem:[%s1234 + $0x80] sm:$0xff]
    %v1252 = vld [vmem:[%s1234 + $0x88] sm:$0xff]
    %v1253 = vld [vmem:[%s1234 + $0x90] sm:$0xff]
    %v1254 = vld [vmem:[%s1234 + $0x98] sm:$0xff]
    %v1255 = vld [vmem:[%s1234 + $0xa0] sm:$0xff]
    %v1256 = vld [vmem:[%s1234 + $0xa8] sm:$0xff]
    %v1257 = vld [vmem:[%s1234 + $0xb0] sm:$0xff]
    %v1258 = vld [vmem:[%s1234 + $0xb8] sm:$0xff]
    %v1259 = vld [vmem:[%s1234 + $0xc0] sm:$0xff]
    %v1260 = vld [vmem:[%s1234 + $0xc8] sm:$0xff]
    %v1261 = vld [vmem:[%s1234 + $0xd0] sm:$0xff]
    %v1262 = vld [vmem:[%s1234 + $0xd8] sm:$0xff]
    %v1263 = vld [vmem:[%s1234 + $0xe0] sm:$0xff]
    %v1264 = vld [vmem:[%s1234 + $0xe8] sm:$0xff]
    %v1265 = vld [vmem:[%s1234 + $0xf0] sm:$0xff]
    %v1266 = vld [vmem:[%s1234 + $0xf8] sm:$0xff]
    %v1267 = vld [vmem:[%s1234 + $0x100] sm:$0xff]
    %v1268 = vld [vmem:[%s1234 + $0x108] sm:$0xff]
    %v1269 = vld [vmem:[%s1234 + $0x110] sm:$0xff]
    %v1270 = vld [vmem:[%s1234 + $0x118] sm:$0xff]
    %v1271 = vld [vmem:[%s1234 + $0x120] sm:$0xff]
    %v1272 = vld [vmem:[%s1234 + $0x128] sm:$0xff]
    %v1273 = vld [vmem:[%s1234 + $0x130] sm:$0xff]
    %v1274 = vld [vmem:[%s1234 + $0x138] sm:$0xff]
    %v1275 = vld [vmem:[%s1234 + $0x140] sm:$0xff]
    %v1276 = vld [vmem:[%s1234 + $0x148] sm:$0xff]
    %v1277 = vld [vmem:[%s1234 + $0x150] sm:$0xff]
    %v1278 = vld [vmem:[%s1234 + $0x158] sm:$0xff]
    %v1279 = vld [vmem:[%s1234 + $0x160] sm:$0xff]
    %v1280 = vld [vmem:[%s1234 + $0x168] sm:$0xff]
    %v1281 = vld [vmem:[%s1234 + $0x170] sm:$0xff]
    %v1282 = vld [vmem:[%s1234 + $0x178] sm:$0xff]
    %v1283 = vld [vmem:[%s1234 + $0x180] sm:$0xff]
    %v1284 = vld [vmem:[%s1234 + $0x188] sm:$0xff]
    %v1285 = vld [vmem:[%s1234 + $0x190] sm:$0xff]
    %v1286 = vld [vmem:[%s1234 + $0x198] sm:$0xff]
    %v1287 = vld [vmem:[%s1234 + $0x1a0] sm:$0xff]
    %v1288 = vld [vmem:[%s1234 + $0x1a8] sm:$0xff]
    %v1289 = vld [vmem:[%s1234 + $0x1b0] sm:$0xff]
    %v1290 = vld [vmem:[%s1234 + $0x1b8] sm:$0xff]
    %v1291 = vld [vmem:[%s1234 + $0x1c0] sm:$0xff]
    %v1292 = vld [vmem:[%s1234 + $0x1c8] sm:$0xff]
    %v1293 = vld [vmem:[%s1234 + $0x1d0] sm:$0xff]
    %v1294 = vld [vmem:[%s1234 + $0x1d8] sm:$0xff]
    %v1295 = vld [vmem:[%s1234 + $0x1e0] sm:$0xff]
    %v1296 = vld [vmem:[%s1234 + $0x1e8] sm:$0xff]
    %v1297 = vld [vmem:[%s1234 + $0x1f0] sm:$0xff]
    %v1298 = vld [vmem:[%s1234 + $0x1f8] sm:$0xff]
    %1299 = vmatpush.msra.mxu0 %v1265
    %1300 = vmatpush.msra.mxu0 %v1263
    %1301 = vmatpush.msra.mxu0 %v1261
    %1302 = vmatpush.msra.mxu0 %v1259
    %1303 = vmatpush.msra.mxu0 %v1257
    %1304 = vmatpush.msra.mxu0 %v1255
    %1305 = vmatpush.msra.mxu0 %v1253
    %1306 = vmatpush.msra.mxu0 %v1251
    %1307 = vmatpush.msra.mxu0 %v1249
    %1308 = vmatpush.msra.mxu0 %v1247
    %1309 = vmatpush.msra.mxu0 %v1245
    %1310 = vmatpush.msra.mxu0 %v1243
    %1311 = vmatpush.msra.mxu0 %v1241
    %1312 = vmatpush.msra.mxu0 %v1239
    %1313 = vmatpush.msra.mxu0 %v1237
    %1314 = vmatpush.msra.mxu0 %v1235
    %1315 = vmatmul.f32.gmra.mxu0 %v1232
    %v1316 = vpop.f32.mrf.mxu0
    %v1317 = vadd.f32 0.0, %v1316
    %1318 = vdwg.mxu0
    %1319 = vmatpush.msra.mxu0 %v1297
    %1320 = vmatpush.msra.mxu0 %v1295
    %1321 = vmatpush.msra.mxu0 %v1293
    %1322 = vmatpush.msra.mxu0 %v1291
    %1323 = vmatpush.msra.mxu0 %v1289
    %1324 = vmatpush.msra.mxu0 %v1287
    %1325 = vmatpush.msra.mxu0 %v1285
    %1326 = vmatpush.msra.mxu0 %v1283
    %1327 = vmatpush.msra.mxu0 %v1281
    %1328 = vmatpush.msra.mxu0 %v1279
    %1329 = vmatpush.msra.mxu0 %v1277
    %1330 = vmatpush.msra.mxu0 %v1275
    %1331 = vmatpush.msra.mxu0 %v1273
    %1332 = vmatpush.msra.mxu0 %v1271
    %1333 = vmatpush.msra.mxu0 %v1269
    %1334 = vmatpush.msra.mxu0 %v1267
    %1335 = vmatmul.f32.gmra.mxu0 %v1233
    %v1336 = vpop.f32.mrf.mxu0
    %v1337 = vadd.f32 %v1317, %v1336
    %1338 = vdwg.mxu0
    %1339 = vmatpush.msra.mxu0 %v1266
    %1340 = vmatpush.msra.mxu0 %v1264
    %1341 = vmatpush.msra.mxu0 %v1262
    %1342 = vmatpush.msra.mxu0 %v1260
    %1343 = vmatpush.msra.mxu0 %v1258
    %1344 = vmatpush.msra.mxu0 %v1256
    %1345 = vmatpush.msra.mxu0 %v1254
    %1346 = vmatpush.msra.mxu0 %v1252
    %1347 = vmatpush.msra.mxu0 %v1250
    %1348 = vmatpush.msra.mxu0 %v1248
    %1349 = vmatpush.msra.mxu0 %v1246
    %1350 = vmatpush.msra.mxu0 %v1244
    %1351 = vmatpush.msra.mxu0 %v1242
    %1352 = vmatpush.msra.mxu0 %v1240
    %1353 = vmatpush.msra.mxu0 %v1238
    %1354 = vmatpush.msra.mxu0 %v1236
    %1355 = vmatmul.f32.gmra.mxu0 %v1232
    %v1356 = vpop.f32.mrf.mxu0
    %v1357 = vadd.f32 0.0, %v1356
    %1358 = vdwg.mxu0
    %1359 = vmatpush.msra.mxu0 %v1298
    %1360 = vmatpush.msra.mxu0 %v1296
    %1361 = vmatpush.msra.mxu0 %v1294
    %1362 = vmatpush.msra.mxu0 %v1292
    %1363 = vmatpush.msra.mxu0 %v1290
    %1364 = vmatpush.msra.mxu0 %v1288
    %1365 = vmatpush.msra.mxu0 %v1286
    %1366 = vmatpush.msra.mxu0 %v1284
    %1367 = vmatpush.msra.mxu0 %v1282
    %1368 = vmatpush.msra.mxu0 %v1280
    %1369 = vmatpush.msra.mxu0 %v1278
    %1370 = vmatpush.msra.mxu0 %v1276
    %1371 = vmatpush.msra.mxu0 %v1274
    %1372 = vmatpush.msra.mxu0 %v1272
    %1373 = vmatpush.msra.mxu0 %v1270
    %1374 = vmatpush.msra.mxu0 %v1268
    %1375 = vmatmul.f32.gmra.mxu0 %v1233
    %v1376 = vpop.f32.mrf.mxu0
    %v1377 = vadd.f32 %v1357, %v1376
    %1378 = vdwg.mxu0
    %v1379 = vmul.f32 %v1337, 1.442695
    %v1380 = vpow.pop %v1379
    %v1381 = vmul.f32 %v1377, 1.442695
    %v1382 = vpow.pop %v1381
    %s1383 = scalar_lea.vmem %s6, 768
    %v1384 = vld [vmem:[%s1383] sm:$0xff]
    %v1385 = vld [vmem:[%s1383 + $0x8] sm:$0xff]
    %v1386 = vld [vmem:[%s1383 + $0x10] sm:$0xff]
    %v1387 = vld [vmem:[%s1383 + $0x18] sm:$0xff]
    %v1388 = vld [vmem:[%s1383 + $0x20] sm:$0xff]
    %v1389 = vld [vmem:[%s1383 + $0x28] sm:$0xff]
    %v1390 = vld [vmem:[%s1383 + $0x30] sm:$0xff]
    %v1391 = vld [vmem:[%s1383 + $0x38] sm:$0xff]
    %v1392 = vld [vmem:[%s1383 + $0x40] sm:$0xff]
    %v1393 = vld [vmem:[%s1383 + $0x48] sm:$0xff]
    %v1394 = vld [vmem:[%s1383 + $0x50] sm:$0xff]
    %v1395 = vld [vmem:[%s1383 + $0x58] sm:$0xff]
    %v1396 = vld [vmem:[%s1383 + $0x60] sm:$0xff]
    %v1397 = vld [vmem:[%s1383 + $0x68] sm:$0xff]
    %v1398 = vld [vmem:[%s1383 + $0x70] sm:$0xff]
    %v1399 = vld [vmem:[%s1383 + $0x78] sm:$0xff]
    %v1400 = vld [vmem:[%s1383 + $0x80] sm:$0xff]
    %v1401 = vld [vmem:[%s1383 + $0x88] sm:$0xff]
    %v1402 = vld [vmem:[%s1383 + $0x90] sm:$0xff]
    %v1403 = vld [vmem:[%s1383 + $0x98] sm:$0xff]
    %v1404 = vld [vmem:[%s1383 + $0xa0] sm:$0xff]
    %v1405 = vld [vmem:[%s1383 + $0xa8] sm:$0xff]
    %v1406 = vld [vmem:[%s1383 + $0xb0] sm:$0xff]
    %v1407 = vld [vmem:[%s1383 + $0xb8] sm:$0xff]
    %v1408 = vld [vmem:[%s1383 + $0xc0] sm:$0xff]
    %v1409 = vld [vmem:[%s1383 + $0xc8] sm:$0xff]
    %v1410 = vld [vmem:[%s1383 + $0xd0] sm:$0xff]
    %v1411 = vld [vmem:[%s1383 + $0xd8] sm:$0xff]
    %v1412 = vld [vmem:[%s1383 + $0xe0] sm:$0xff]
    %v1413 = vld [vmem:[%s1383 + $0xe8] sm:$0xff]
    %v1414 = vld [vmem:[%s1383 + $0xf0] sm:$0xff]
    %v1415 = vld [vmem:[%s1383 + $0xf8] sm:$0xff]
    %s1416 = scalar_lea.vmem %s7, 3
    %v1417 = vld [vmem:[%s1416] sm:$0x1]
    %v1419 = vperm.slane %v1417, 0
    %1421 = vmatpush.msra.mxu0 %v1399
    %1422 = vmatpush.msra.mxu0 %v1398
    %1423 = vmatpush.msra.mxu0 %v1397
    %1424 = vmatpush.msra.mxu0 %v1396
    %1425 = vmatpush.msra.mxu0 %v1395
    %1426 = vmatpush.msra.mxu0 %v1394
    %1427 = vmatpush.msra.mxu0 %v1393
    %1428 = vmatpush.msra.mxu0 %v1392
    %1429 = vmatpush.msra.mxu0 %v1391
    %1430 = vmatpush.msra.mxu0 %v1390
    %1431 = vmatpush.msra.mxu0 %v1389
    %1432 = vmatpush.msra.mxu0 %v1388
    %1433 = vmatpush.msra.mxu0 %v1387
    %1434 = vmatpush.msra.mxu0 %v1386
    %1435 = vmatpush.msra.mxu0 %v1385
    %1436 = vmatpush.msra.mxu0 %v1384
    %1437 = vmatmul.f32.gmra.mxu0 %v1380
    %v1438 = vpop.f32.mrf.mxu0
    %v1439 = vadd.f32 %v1419, %v1438
    %1440 = vdwg.mxu0
    %1441 = vmatpush.msra.mxu0 %v1415
    %1442 = vmatpush.msra.mxu0 %v1414
    %1443 = vmatpush.msra.mxu0 %v1413
    %1444 = vmatpush.msra.mxu0 %v1412
    %1445 = vmatpush.msra.mxu0 %v1411
    %1446 = vmatpush.msra.mxu0 %v1410
    %1447 = vmatpush.msra.mxu0 %v1409
    %1448 = vmatpush.msra.mxu0 %v1408
    %1449 = vmatpush.msra.mxu0 %v1407
    %1450 = vmatpush.msra.mxu0 %v1406
    %1451 = vmatpush.msra.mxu0 %v1405
    %1452 = vmatpush.msra.mxu0 %v1404
    %1453 = vmatpush.msra.mxu0 %v1403
    %1454 = vmatpush.msra.mxu0 %v1402
    %1455 = vmatpush.msra.mxu0 %v1401
    %1456 = vmatpush.msra.mxu0 %v1400
    %1457 = vmatmul.f32.gmra.mxu0 %v1382
    %v1458 = vpop.f32.mrf.mxu0
    %v1459 = vadd.f32 %v1439, %v1458
    %1460 = vdwg.mxu0
    %s1461 = sld [smem:[#allocation6 + $0x3]]
    %v1462 = vstv %s1461
    %v1463 = vmul.f32 %v1118, %v1462
    %v1464 = vadd.f32 %v1459, %v1463
    %s1465 = sld [smem:[#allocation7 + $0x3]]
    %v1466 = vstv %s1465
    %v1467 = vadd.f32 %v1464, %v1466
    %1468 = vst.msk [vmem:[#allocation9] sm:$0xff] %vm85, %v1467
    // Predicated region
    $region54: #{tpu_custom_call.1} parent=1 // pred_check
      _
    $region55: #{tpu_custom_call.1} parent=1 // pred_check_branch
      %1470 = sbr.rel (0) target = $region57
    $region56: #{tpu_custom_call.1} parent=1 // pred_region
      %1472 = vsyncadd [#allocation4], 0
      %s1474 = sshll.u32 [#allocation9], 4
      %s1475 = int_to_ptr.vmem [resolvable:$true] %s1474
      %s1476 = sshll.u32 %s10, 4
      %s1477 = int_to_ptr.hbm [resolvable:$true] %s1476
      %1479 = dma.vmem_to_hbm [thread:$0]  %s1475, 128, %s1477, [#allocation4]
    $region57: #{tpu_custom_call.1} parent=1 // pred_fallthru
      _
    // Predicated region
    $region58: #{tpu_custom_call.1} parent=1 // pred_check
      _
    $region59: #{tpu_custom_call.1} parent=1 // pred_check_branch
      %1481 = sbr.rel (0) target = $region61
    $region60: #{tpu_custom_call.1} parent=1 // pred_region
      %1483 = dma.done [#allocation4], 128
    $region61: #{tpu_custom_call.1} parent=1 // pred_fallthru
      _
    %1484 = vsyncpa [#allocation3], 1
    %1485 = vsyncpa [#allocation4], 1
    %1486 = vsyncpa [#allocation5], 1
    %1487 = vsyncpa [#allocation8], 1

</llo_original>
